<compile_context>
chip_gen: v5e
topology: v5e:2x2
jax: 0.10.0
libtpu: 0.0.40
codegen_flags: <defaults>
</compile_context>

<pallas_src>
import math

import jax
import jax.numpy as jnp
from jax.experimental import pallas as pl
from jax.experimental.pallas import tpu as pltpu

# MXU operand dtype for the weight matrices / big dots.  For production MAC dims
# (D = 512, N ~ 196, MAX_ITER = 12) set this to jnp.bfloat16 (2x MXU throughput and
# half the resident-weight VMEM); the recurrent carry, biases, softmax and elu stay
# f32 regardless.  Kept f32 here so the toy-size correctness check stays tight.
MATMUL_DTYPE = jnp.float32


def _elu(x):
    # alpha = 1.0, matches F.elu
    return jnp.where(x > 0, x, jnp.exp(jnp.minimum(x, 0.0)) - 1.0)


def _mm(a, b):
    """MXU dot. Weights (b) are pre-cast once in the wrapper; activations are cast
    here only when a reduced MATMUL_DTYPE is requested (no-op for f32)."""
    if MATMUL_DTYPE != jnp.float32:
        a = a.astype(MATMUL_DTYPE)
    return jnp.dot(a, b, preferred_element_type=jnp.float32)


def mac_kernel(
    # per-batch-tile data
    words_ref, question_ref, img_ref, control0_ref, memory0_ref, masks_ref,
    # ControlUnit weights
    w_sh_ref, b_sh_ref, w_pos_ref, b_pos_ref,
    w_cq_c_ref, w_cq_p_ref, b_cq_ref, w_ca_ref, b_ca_ref,
    # ReadUnit weights
    w_mem_ref, b_mem_ref, w_kb_ref, b_kb_ref,
    w_c1_i_ref, w_c1_k_ref, b_c1_ref, w_c2_ref, b_c2_ref, w_ra_ref, b_ra_ref,
    # WriteUnit weights
    w_w_r_ref, w_w_m_ref, b_w_ref,
    # outputs: final control / final memory for this batch tile
    out_c_ref, out_m_ref,
    # VMEM scratch: recurrent carry + step-invariant caches
    ctrl_s, mem_s, q_s, know_s, pk_s, pk1_s,
):
    step = pl.program_id(1)
    TB, S, D = words_ref.shape
    N = img_ref.shape[2]

    # ---- step 0: init recurrent state and hoist ALL step-invariant work ----------
    # NOTE: correctness relies on the step axis being the innermost (last) grid axis:
    # the carry and the caches are (re)initialised only when step == 0, per batch tile.
    @pl.when(step == 0)
    def _init():
        ctrl_s[...] = control0_ref[...].astype(jnp.float32)
        mem_s[...] = memory0_ref[...].astype(jnp.float32)
        # q = tanh(question @ w_sh + b_sh) does not depend on control/memory.
        q_s[...] = jnp.tanh(_mm(question_ref[...], w_sh_ref[...]) + b_sh_ref[...])
        # know = img.permute(0, 2, 1): one small 2-D XLU transpose per tile element,
        # done once (not per step).
        for i in range(TB):
            know_s[i] = img_ref[i].T.astype(jnp.float32)
        know_flat = know_s[...].reshape(TB * N, D)
        pk_flat = _mm(know_flat, w_kb_ref[...]) + b_kb_ref[...]
        pk_s[...] = pk_flat.reshape(TB, N, D)
        # Hoist the proj_know half of the read concat-Linear (+ its bias).
        pk1_s[...] = _mm(pk_flat, w_c1_k_ref[...]) + b_c1_ref[...]

    control = ctrl_s[...]            # [TB, D]   controls[-1]
    memory = mem_s[...]              # [TB, D]   memories[-1]
    words = words_ref[...]           # [TB, S, D]

    # ---------------- ControlUnit ----------------
    pa = _mm(q_s[...], w_pos_ref[step]) + b_pos_ref[step]                 # [TB, D]
    cq = _mm(control, w_cq_c_ref[...]) + _mm(pa, w_cq_p_ref[...]) + b_cq_ref[...]
    v = cq * w_ca_ref[...]                                                # [TB, D]
    # logits[b,s] = sum_d v[b,d] * words[b,s,d] + b_ca  (lane reduce; no .T, no M=1 dot)
    logits = jnp.sum(v[:, None, :] * words, axis=-1) + b_ca_ref[0, 0]     # [TB, S]
    m1 = jnp.max(logits, axis=-1, keepdims=True)
    e1 = jnp.exp(logits - m1)
    attn = e1 / jnp.sum(e1, axis=-1, keepdims=True)                       # exact softmax
    next_control = jnp.sum(attn[:, :, None] * words, axis=1)              # [TB, D]

    # ---------------- ReadUnit ----------------
    last_mem = memory * masks_ref[...]
    proj_mem = _mm(last_mem, w_mem_ref[...]) + b_mem_ref[...]             # [TB, D]
    inter = proj_mem[:, None, :] * pk_s[...]                              # [TB, N, D]
    # split concat-Linear: inter @ w_c1[:D] + (hoisted) proj_know @ w_c1[D:] + b_c1
    c1 = _elu(_mm(inter.reshape(TB * N, D), w_c1_i_ref[...]) + pk1_s[...])
    c2 = _mm(c1, w_c2_ref[...]) + b_c2_ref[...]                           # [TB*N, D]
    a = _elu(c2.reshape(TB, N, D) * next_control[:, None, :])             # [TB, N, D]
    rlog = jnp.sum(a * w_ra_ref[...], axis=-1) + b_ra_ref[0, 0]           # [TB, N]
    m2 = jnp.max(rlog, axis=-1, keepdims=True)
    e2 = jnp.exp(rlog - m2)
    rattn = e2 / jnp.sum(e2, axis=-1, keepdims=True)
    read = jnp.sum(rattn[:, :, None] * know_s[...], axis=1)               # [TB, D]

    # ---------------- WriteUnit (SELF_ATT=False) ----------------
    next_memory = (_mm(read, w_w_r_ref[...]) + _mm(memory, w_w_m_ref[...])
                   + b_w_ref[...])                                        # [TB, D]

    # ---- carry + final output ------------------------------------------------------
    ctrl_s[...] = next_control
    mem_s[...] = next_memory

    @pl.when(step == pl.num_programs(1) - 1)
    def _finalize():
        out_c_ref[...] = next_control.astype(out_c_ref.dtype)
        out_m_ref[...] = next_memory.astype(out_m_ref.dtype)


def mac_forward(words, question, img, control0, memory0, masks, params, max_iter,
                tile_b=None):
    """Run the full MAC recurrence (max_iter MACCell steps) in one pallas_call.

    img is [B, D, N] (PyTorch channels-first layout); the permute to [B, N, D] is
    folded into the kernel (once per batch tile).  Returns (control, memory), [B, D].
    For v7x (64 MiB VMEM) keep TILE_B modest and B // TILE_B >= 2 so both TensorCores
    get work; at production sizes pad N to a multiple of 8 (ideally 128).
    """
    B, S, D = words.shape
    N = img.shape[2]
    if tile_b is None:
        tile_b = min(8, B)
    assert B % tile_b == 0, "pad the batch so TILE_B divides it"
    p = params
    cast_w = (lambda x: x.astype(MATMUL_DTYPE))   # pre-cast weights once (no per-step casts)

    weight_args = [
        cast_w(p["w_sh"]), p["b_sh"],
        cast_w(p["w_pos"]), p["b_pos"],
        cast_w(p["w_cq"][:D]), cast_w(p["w_cq"][D:]), p["b_cq"],
        p["w_ca"], p["b_ca"],
        cast_w(p["w_mem"]), p["b_mem"],
        cast_w(p["w_kb"]), p["b_kb"],
        cast_w(p["w_c1"][:D]), cast_w(p["w_c1"][D:]), p["b_c1"],
        cast_w(p["w_c2"]), p["b_c2"],
        p["w_ra"], p["b_ra"],
        cast_w(p["w_w"][:D]), cast_w(p["w_w"][D:]), p["b_w"],
    ]

    def tile3(d1, d2):
        return pl.BlockSpec((tile_b, d1, d2), lambda b, t: (b, 0, 0))

    def tile2(d1):
        return pl.BlockSpec((tile_b, d1), lambda b, t: (b, 0))

    def const(shape):
        # Whole array resident in VMEM; constant index_map => DMA'd once, never re-DMA'd.
        # TODO(synk): pipeline_mode=pl.Buffered(1) would halve the resident-weight VMEM
        #             footprint on v7x; left at the default buffering to keep lowering simple.
        nd = len(shape)
        return pl.BlockSpec(shape, lambda b, t, _n=nd: (0,) * _n)

    def smem_scalar():
        return pl.BlockSpec(memory_space=pltpu.MemorySpace.SMEM)

    weight_specs = [
        const((D, D)), const((1, D)),                       # w_sh, b_sh
        const((max_iter, D, D)), const((max_iter, 1, D)),   # w_pos, b_pos (fully resident)
        const((D, D)), const((D, D)), const((1, D)),        # w_cq split, b_cq
        const((1, D)), smem_scalar(),                       # w_ca, b_ca (SMEM scalar)
        const((D, D)), const((1, D)),                       # w_mem, b_mem
        const((D, D)), const((1, D)),                       # w_kb, b_kb
        const((D, D)), const((D, D)), const((1, D)),        # w_c1 split, b_c1
        const((D, D)), const((1, D)),                       # w_c2, b_c2
        const((1, D)), smem_scalar(),                       # w_ra, b_ra (SMEM scalar)
        const((D, D)), const((D, D)), const((1, D)),        # w_w split, b_w
    ]

    in_specs = [
        tile3(S, D),    # words
        tile2(D),       # question
        tile3(D, N),    # img (untransposed)
        tile2(D),       # control0
        tile2(D),       # memory0
        tile2(D),       # masks
    ] + weight_specs

    out_specs = [tile2(D), tile2(D)]
    out_shape = (jax.ShapeDtypeStruct((B, D), jnp.float32),
                 jax.ShapeDtypeStruct((B, D), jnp.float32))

    # Grid: batch tiles (parallel), recurrence step innermost ("arbitrary").  The step
    # axis MUST stay last: the VMEM carry / caches are re-initialised only at step==0.
    grid_spec = pltpu.PrefetchScalarGridSpec(
        num_scalar_prefetch=0,
        grid=(B // tile_b, max_iter),
        in_specs=in_specs,
        out_specs=out_specs,
        scratch_shapes=[
            pltpu.VMEM((tile_b, D), jnp.float32),        # control carry
            pltpu.VMEM((tile_b, D), jnp.float32),        # memory carry
            pltpu.VMEM((tile_b, D), jnp.float32),        # q = tanh(question@w_sh) cache
            pltpu.VMEM((tile_b, N, D), jnp.float32),     # know (img^T) cache
            pltpu.VMEM((tile_b, N, D), jnp.float32),     # proj_know cache
            pltpu.VMEM((tile_b * N, D), jnp.float32),    # proj_know@w_c1[D:]+b_c1 cache
        ],
    )
    out_c, out_m = pl.pallas_call(
        mac_kernel,
        out_shape=out_shape,
        grid_spec=grid_spec,
        compiler_params=pltpu.CompilerParams(
            dimension_semantics=("parallel", "arbitrary"),
            vmem_limit_bytes=64 * 1024 * 1024),
    )(words, question, img, control0, memory0, masks, *weight_args)
    return out_c, out_m


# ---------------- deterministic parameter init (xavier_uniform, zero bias) ------------
def _xavier_t(key, in_dim, out_dim):
    """PyTorch Linear weight is [out, in]; return it transposed to [in, out]."""
    bound = math.sqrt(6.0 / (in_dim + out_dim))
    w = jax.random.uniform(key, (out_dim, in_dim), jnp.float32, -bound, bound)
    return jnp.transpose(w)


def make_params(key, dim, max_iter):
    D = dim
    ks = jax.random.split(key, 12)
    pos_keys = jax.random.split(ks[1], max_iter)
    bound1 = math.sqrt(6.0 / (D + 1))
    return {
        "w_sh": _xavier_t(ks[0], D, D), "b_sh": jnp.zeros((1, D), jnp.float32),
        "w_pos": jnp.stack([_xavier_t(k, D, D) for k in pos_keys]),      # [T, D, D]
        "b_pos": jnp.zeros((max_iter, 1, D), jnp.float32),               # [T, 1, D]
        "w_cq": _xavier_t(ks[2], 2 * D, D), "b_cq": jnp.zeros((1, D), jnp.float32),
        "w_ca": jax.random.uniform(ks[3], (1, D), jnp.float32, -bound1, bound1),
        "b_ca": jnp.zeros((1, 1), jnp.float32),
        "w_mem": _xavier_t(ks[4], D, D), "b_mem": jnp.zeros((1, D), jnp.float32),
        "w_kb": _xavier_t(ks[5], D, D), "b_kb": jnp.zeros((1, D), jnp.float32),
        "w_c1": _xavier_t(ks[6], 2 * D, D), "b_c1": jnp.zeros((1, D), jnp.float32),
        "w_c2": _xavier_t(ks[7], D, D), "b_c2": jnp.zeros((1, D), jnp.float32),
        "w_ra": jax.random.uniform(ks[8], (1, D), jnp.float32, -bound1, bound1),
        "b_ra": jnp.zeros((1, 1), jnp.float32),
        "w_w": _xavier_t(ks[9], 2 * D, D), "b_w": jnp.zeros((1, D), jnp.float32),
    }


# ---------------- pure-JAX reference (mirrors the PyTorch forward, looped) -------------
def ref_mac(words, question, img, control0, memory0, masks, p, max_iter):
    know = jnp.transpose(img, (0, 2, 1))
    control, memory = control0, memory0
    for t in range(max_iter):
        q = jnp.tanh(question @ p["w_sh"] + p["b_sh"])
        pa = q @ p["w_pos"][t] + p["b_pos"][t]
        cq = jnp.concatenate([control, pa], axis=1) @ p["w_cq"] + p["b_cq"]
        ctx = cq[:, None, :] * words
        logits = ctx @ p["w_ca"].T + p["b_ca"]
        attn = jax.nn.softmax(logits, axis=1)
        next_control = jnp.sum(attn * words, axis=1)

        last_mem = memory * masks
        proj_mem = last_mem @ p["w_mem"] + p["b_mem"]
        proj_know = know @ p["w_kb"] + p["b_kb"]
        cat = jnp.concatenate([proj_mem[:, None, :] * proj_know, proj_know], axis=2)
        c1 = jax.nn.elu(cat @ p["w_c1"] + p["b_c1"])
        c2 = c1 @ p["w_c2"] + p["b_c2"]
        a = jax.nn.elu(c2 * next_control[:, None, :])
        rlog = a @ p["w_ra"].T + p["b_ra"]
        rattn = jax.nn.softmax(rlog, axis=1)
        read = jnp.sum(rattn * know, axis=1)

        next_memory = jnp.concatenate([read, memory], axis=1) @ p["w_w"] + p["b_w"]
        control, memory = next_control, next_memory
    return control, memory


if __name__ == "__main__":
    B, S, N, D = 2, 8, 16, 32     # batch, question words, knowledge positions, MAC dim
    MAX_ITER = 4

    key = jax.random.PRNGKey(0)
    k_words, k_q, k_img, k_params = jax.random.split(key, 4)

    words = jax.random.normal(k_words, (B, S, D), jnp.float32)
    question = jax.random.normal(k_q, (B, D), jnp.float32)
    img = jax.random.normal(k_img, (B, D, N), jnp.float32)   # knowledge, [B, D, N]

    # init_hidden with INIT_CNTRL_AS_Q=True, mem_0 = zeros, MEM_DROPOUT=0 -> masks=1
    control0 = question
    memory0 = jnp.zeros((B, D), jnp.float32)
    masks = jnp.ones((B, D), jnp.float32)

    params = make_params(k_params, D, MAX_ITER)

    next_control, next_memory = mac_forward(
        words, question, img, control0, memory0, masks, params, MAX_ITER)
    jax.block_until_ready((next_control, next_memory))

    ref_c, ref_m = ref_mac(words, question, img, control0, memory0, masks,
                           params, MAX_ITER)

    # Exact softmax divide + f32 MXU accumulation -> tolerance tightened from 1e-2.
    assert jnp.allclose(next_control, ref_c, atol=1e-3, rtol=1e-3), "control mismatch"
    assert jnp.allclose(next_memory, ref_m, atol=1e-3, rtol=1e-3), "memory mismatch"
    print("KERNEL_OK")
</pallas_src>

<mosaic_0001>
module attributes {stable_mosaic.version = 11 : i64} {
  func.func @mac_kernel(%arg0: i32, %arg1: i32, %arg2: memref<2x8x32xf32, #tpu.memory_space<vmem>>, %arg3: memref<2x32xf32, #tpu.memory_space<vmem>>, %arg4: memref<2x32x16xf32, #tpu.memory_space<vmem>>, %arg5: memref<2x32xf32, #tpu.memory_space<vmem>>, %arg6: memref<2x32xf32, #tpu.memory_space<vmem>>, %arg7: memref<2x32xf32, #tpu.memory_space<vmem>>, %arg8: memref<32x32xf32, #tpu.memory_space<vmem>>, %arg9: memref<1x32xf32, #tpu.memory_space<vmem>>, %arg10: memref<4x32x32xf32, #tpu.memory_space<vmem>>, %arg11: memref<4x1x32xf32, #tpu.memory_space<vmem>>, %arg12: memref<32x32xf32, #tpu.memory_space<vmem>>, %arg13: memref<32x32xf32, #tpu.memory_space<vmem>>, %arg14: memref<1x32xf32, #tpu.memory_space<vmem>>, %arg15: memref<1x32xf32, #tpu.memory_space<vmem>>, %arg16: memref<1x1xf32, #tpu.memory_space<smem>>, %arg17: memref<32x32xf32, #tpu.memory_space<vmem>>, %arg18: memref<1x32xf32, #tpu.memory_space<vmem>>, %arg19: memref<32x32xf32, #tpu.memory_space<vmem>>, %arg20: memref<1x32xf32, #tpu.memory_space<vmem>>, %arg21: memref<32x32xf32, #tpu.memory_space<vmem>>, %arg22: memref<32x32xf32, #tpu.memory_space<vmem>>, %arg23: memref<1x32xf32, #tpu.memory_space<vmem>>, %arg24: memref<32x32xf32, #tpu.memory_space<vmem>>, %arg25: memref<1x32xf32, #tpu.memory_space<vmem>>, %arg26: memref<1x32xf32, #tpu.memory_space<vmem>>, %arg27: memref<1x1xf32, #tpu.memory_space<smem>>, %arg28: memref<32x32xf32, #tpu.memory_space<vmem>>, %arg29: memref<32x32xf32, #tpu.memory_space<vmem>>, %arg30: memref<1x32xf32, #tpu.memory_space<vmem>>, %arg31: memref<2x32xf32, #tpu.memory_space<vmem>>, %arg32: memref<2x32xf32, #tpu.memory_space<vmem>>, %arg33: memref<2x32xf32, #tpu.memory_space<vmem>>, %arg34: memref<2x32xf32, #tpu.memory_space<vmem>>, %arg35: memref<2x32xf32, #tpu.memory_space<vmem>>, %arg36: memref<2x16x32xf32, #tpu.memory_space<vmem>>, %arg37: memref<2x16x32xf32, #tpu.memory_space<vmem>>, %arg38: memref<32x32xf32, #tpu.memory_space<vmem>>) attributes {dimension_semantics = [#tpu.dimension_semantics<parallel>, #tpu.dimension_semantics<arbitrary>], iteration_bounds = array<i64: 1, 4>, scalar_prefetch = 0 : i64, scratch_operands = 6 : i64, tpu.core_type = #tpu.core_type<tc>, window_params = [{transform_indices = @transform_0, window_bounds = array<i64: 2, 8, 32>}, {transform_indices = @transform_1, window_bounds = array<i64: 2, 32>}, {transform_indices = @transform_2, window_bounds = array<i64: 2, 32, 16>}, {transform_indices = @transform_3, window_bounds = array<i64: 2, 32>}, {transform_indices = @transform_4, window_bounds = array<i64: 2, 32>}, {transform_indices = @transform_5, window_bounds = array<i64: 2, 32>}, {pipeline_mode = #tpu.pipeline_mode<synchronous>, transform_indices = @transform_6, window_bounds = array<i64: 32, 32>}, {pipeline_mode = #tpu.pipeline_mode<synchronous>, transform_indices = @transform_7, window_bounds = array<i64: 1, 32>}, {pipeline_mode = #tpu.pipeline_mode<synchronous>, transform_indices = @transform_8, window_bounds = array<i64: 4, 32, 32>}, {pipeline_mode = #tpu.pipeline_mode<synchronous>, transform_indices = @transform_9, window_bounds = array<i64: 4, 1, 32>}, {pipeline_mode = #tpu.pipeline_mode<synchronous>, transform_indices = @transform_10, window_bounds = array<i64: 32, 32>}, {pipeline_mode = #tpu.pipeline_mode<synchronous>, transform_indices = @transform_11, window_bounds = array<i64: 32, 32>}, {pipeline_mode = #tpu.pipeline_mode<synchronous>, transform_indices = @transform_12, window_bounds = array<i64: 1, 32>}, {pipeline_mode = #tpu.pipeline_mode<synchronous>, transform_indices = @transform_13, window_bounds = array<i64: 1, 32>}, {transform_indices = @transform_14, window_bounds = array<i64: 1, 1>}, {pipeline_mode = #tpu.pipeline_mode<synchronous>, transform_indices = @transform_15, window_bounds = array<i64: 32, 32>}, {pipeline_mode = #tpu.pipeline_mode<synchronous>, transform_indices = @transform_16, window_bounds = array<i64: 1, 32>}, {pipeline_mode = #tpu.pipeline_mode<synchronous>, transform_indices = @transform_17, window_bounds = array<i64: 32, 32>}, {pipeline_mode = #tpu.pipeline_mode<synchronous>, transform_indices = @transform_18, window_bounds = array<i64: 1, 32>}, {pipeline_mode = #tpu.pipeline_mode<synchronous>, transform_indices = @transform_19, window_bounds = array<i64: 32, 32>}, {pipeline_mode = #tpu.pipeline_mode<synchronous>, transform_indices = @transform_20, window_bounds = array<i64: 32, 32>}, {pipeline_mode = #tpu.pipeline_mode<synchronous>, transform_indices = @transform_21, window_bounds = array<i64: 1, 32>}, {pipeline_mode = #tpu.pipeline_mode<synchronous>, transform_indices = @transform_22, window_bounds = array<i64: 32, 32>}, {pipeline_mode = #tpu.pipeline_mode<synchronous>, transform_indices = @transform_23, window_bounds = array<i64: 1, 32>}, {pipeline_mode = #tpu.pipeline_mode<synchronous>, transform_indices = @transform_24, window_bounds = array<i64: 1, 32>}, {transform_indices = @transform_25, window_bounds = array<i64: 1, 1>}, {pipeline_mode = #tpu.pipeline_mode<synchronous>, transform_indices = @transform_26, window_bounds = array<i64: 32, 32>}, {pipeline_mode = #tpu.pipeline_mode<synchronous>, transform_indices = @transform_27, window_bounds = array<i64: 32, 32>}, {pipeline_mode = #tpu.pipeline_mode<synchronous>, transform_indices = @transform_28, window_bounds = array<i64: 1, 32>}, {transform_indices = @transform_29, window_bounds = array<i64: 2, 32>}, {transform_indices = @transform_30, window_bounds = array<i64: 2, 32>}]} {
    %c0_i32 = arith.constant 0 : i32
    %0 = arith.cmpi eq, %arg1, %c0_i32 : i32
    %1 = arith.extui %0 : i1 to i32
    %c0_i32_0 = arith.constant 0 : i32
    %2 = arith.cmpi ne, %1, %c0_i32_0 : i32
    scf.if %2 {
      %c0_79 = arith.constant 0 : index
      %c0_80 = arith.constant 0 : index
      %123 = vector.load %arg5[%c0_79, %c0_80] : memref<2x32xf32, #tpu.memory_space<vmem>>, vector<2x32xf32>
      %c0_81 = arith.constant 0 : index
      %c0_82 = arith.constant 0 : index
      %124 = vector.load %arg33[%c0_81, %c0_82] : memref<2x32xf32, #tpu.memory_space<vmem>>, vector<2x32xf32>
      tpu.vector_store %arg33[%c0_81, %c0_82], %123 {strides = array<i32>} : memref<2x32xf32, #tpu.memory_space<vmem>>, vector<2x32xf32>,
      %c0_83 = arith.constant 0 : index
      %c0_84 = arith.constant 0 : index
      %125 = vector.load %arg6[%c0_83, %c0_84] : memref<2x32xf32, #tpu.memory_space<vmem>>, vector<2x32xf32>
      %c0_85 = arith.constant 0 : index
      %c0_86 = arith.constant 0 : index
      %126 = vector.load %arg34[%c0_85, %c0_86] : memref<2x32xf32, #tpu.memory_space<vmem>>, vector<2x32xf32>
      tpu.vector_store %arg34[%c0_85, %c0_86], %125 {strides = array<i32>} : memref<2x32xf32, #tpu.memory_space<vmem>>, vector<2x32xf32>,
      %c0_87 = arith.constant 0 : index
      %c0_88 = arith.constant 0 : index
      %127 = vector.load %arg3[%c0_87, %c0_88] : memref<2x32xf32, #tpu.memory_space<vmem>>, vector<2x32xf32>
      %c0_89 = arith.constant 0 : index
      %c0_90 = arith.constant 0 : index
      %128 = vector.load %arg8[%c0_89, %c0_90] : memref<32x32xf32, #tpu.memory_space<vmem>>, vector<32x32xf32>
      %cst_91 = arith.constant dense<0.000000e+00> : vector<2x32xf32>
      %129 = tpu.matmul %127, %128, %cst_91 {dimension_numbers = #tpu.dot_dimension_numbers<[1], [0], [0], [1], [0, 0, 1, 1], [], []>} : vector<2x32xf32>, vector<32x32xf32>, vector<2x32xf32> -> vector<2x32xf32>
      %c0_92 = arith.constant 0 : index
      %c0_93 = arith.constant 0 : index
      %130 = vector.load %arg9[%c0_92, %c0_93] : memref<1x32xf32, #tpu.memory_space<vmem>>, vector<1x32xf32>
      %131 = vector.broadcast %130 : vector<1x32xf32> to vector<2x32xf32>
      %132 = arith.addf %129, %131 : vector<2x32xf32>
      %133 = math.tanh %132 : vector<2x32xf32>
      %c0_94 = arith.constant 0 : index
      %c0_95 = arith.constant 0 : index
      %134 = vector.load %arg35[%c0_94, %c0_95] : memref<2x32xf32, #tpu.memory_space<vmem>>, vector<2x32xf32>
      tpu.vector_store %arg35[%c0_94, %c0_95], %133 {strides = array<i32>} : memref<2x32xf32, #tpu.memory_space<vmem>>, vector<2x32xf32>,
      %c0_96 = arith.constant 0 : index
      %c0_97 = arith.constant 0 : index
      %c0_98 = arith.constant 0 : index
      %135 = vector.load %arg4[%c0_96, %c0_97, %c0_98] : memref<2x32x16xf32, #tpu.memory_space<vmem>>, vector<1x32x16xf32>
      %136 = vector.shape_cast %135 : vector<1x32x16xf32> to vector<32x16xf32>
      %137 = tpu.transpose %136, [1, 0] : vector<32x16xf32> -> vector<16x32xf32>
      %c0_99 = arith.constant 0 : index
      %c0_100 = arith.constant 0 : index
      %c0_101 = arith.constant 0 : index
      %138 = vector.load %arg36[%c0_99, %c0_100, %c0_101] : memref<2x16x32xf32, #tpu.memory_space<vmem>>, vector<1x16x32xf32>
      %139 = vector.shape_cast %138 : vector<1x16x32xf32> to vector<16x32xf32>
      %140 = vector.shape_cast %137 : vector<16x32xf32> to vector<1x16x32xf32>
      tpu.vector_store %arg36[%c0_99, %c0_100, %c0_101], %140 {strides = array<i32>} : memref<2x16x32xf32, #tpu.memory_space<vmem>>, vector<1x16x32xf32>,
      %c1 = arith.constant 1 : index
      %c0_102 = arith.constant 0 : index
      %c0_103 = arith.constant 0 : index
      %141 = vector.load %arg4[%c1, %c0_102, %c0_103] : memref<2x32x16xf32, #tpu.memory_space<vmem>>, vector<1x32x16xf32>
      %142 = vector.shape_cast %141 : vector<1x32x16xf32> to vector<32x16xf32>
      %143 = tpu.transpose %142, [1, 0] : vector<32x16xf32> -> vector<16x32xf32>
      %c1_104 = arith.constant 1 : index
      %c0_105 = arith.constant 0 : index
      %c0_106 = arith.constant 0 : index
      %144 = vector.load %arg36[%c1_104, %c0_105, %c0_106] : memref<2x16x32xf32, #tpu.memory_space<vmem>>, vector<1x16x32xf32>
      %145 = vector.shape_cast %144 : vector<1x16x32xf32> to vector<16x32xf32>
      %146 = vector.shape_cast %143 : vector<16x32xf32> to vector<1x16x32xf32>
      tpu.vector_store %arg36[%c1_104, %c0_105, %c0_106], %146 {strides = array<i32>} : memref<2x16x32xf32, #tpu.memory_space<vmem>>, vector<1x16x32xf32>,
      %c0_107 = arith.constant 0 : index
      %c0_108 = arith.constant 0 : index
      %c0_109 = arith.constant 0 : index
      %147 = vector.load %arg36[%c0_107, %c0_108, %c0_109] : memref<2x16x32xf32, #tpu.memory_space<vmem>>, vector<2x16x32xf32>
      %148 = vector.shape_cast %147 : vector<2x16x32xf32> to vector<32x32xf32>
      %c0_110 = arith.constant 0 : index
      %c0_111 = arith.constant 0 : index
      %149 = vector.load %arg19[%c0_110, %c0_111] : memref<32x32xf32, #tpu.memory_space<vmem>>, vector<32x32xf32>
      %cst_112 = arith.constant dense<0.000000e+00> : vector<32x32xf32>
      %150 = tpu.matmul %148, %149, %cst_112 {dimension_numbers = #tpu.dot_dimension_numbers<[1], [0], [0], [1], [0, 0, 1, 1], [], []>} : vector<32x32xf32>, vector<32x32xf32>, vector<32x32xf32> -> vector<32x32xf32>
      %c0_113 = arith.constant 0 : index
      %c0_114 = arith.constant 0 : index
      %151 = vector.load %arg20[%c0_113, %c0_114] : memref<1x32xf32, #tpu.memory_space<vmem>>, vector<1x32xf32>
      %152 = vector.broadcast %151 : vector<1x32xf32> to vector<32x32xf32>
      %153 = arith.addf %150, %152 : vector<32x32xf32>
      %154 = vector.shape_cast %153 : vector<32x32xf32> to vector<2x16x32xf32>
      %c0_115 = arith.constant 0 : index
      %c0_116 = arith.constant 0 : index
      %c0_117 = arith.constant 0 : index
      %155 = vector.load %arg37[%c0_115, %c0_116, %c0_117] : memref<2x16x32xf32, #tpu.memory_space<vmem>>, vector<2x16x32xf32>
      tpu.vector_store %arg37[%c0_115, %c0_116, %c0_117], %154 {strides = array<i32>} : memref<2x16x32xf32, #tpu.memory_space<vmem>>, vector<2x16x32xf32>,
      %c0_118 = arith.constant 0 : index
      %c0_119 = arith.constant 0 : index
      %156 = vector.load %arg22[%c0_118, %c0_119] : memref<32x32xf32, #tpu.memory_space<vmem>>, vector<32x32xf32>
      %cst_120 = arith.constant dense<0.000000e+00> : vector<32x32xf32>
      %157 = tpu.matmul %153, %156, %cst_120 {dimension_numbers = #tpu.dot_dimension_numbers<[1], [0], [0], [1], [0, 0, 1, 1], [], []>} : vector<32x32xf32>, vector<32x32xf32>, vector<32x32xf32> -> vector<32x32xf32>
      %c0_121 = arith.constant 0 : index
      %c0_122 = arith.constant 0 : index
      %158 = vector.load %arg23[%c0_121, %c0_122] : memref<1x32xf32, #tpu.memory_space<vmem>>, vector<1x32xf32>
      %159 = vector.broadcast %158 : vector<1x32xf32> to vector<32x32xf32>
      %160 = arith.addf %157, %159 : vector<32x32xf32>
      %c0_123 = arith.constant 0 : index
      %c0_124 = arith.constant 0 : index
      %161 = vector.load %arg38[%c0_123, %c0_124] : memref<32x32xf32, #tpu.memory_space<vmem>>, vector<32x32xf32>
      tpu.vector_store %arg38[%c0_123, %c0_124], %160 {strides = array<i32>} : memref<32x32xf32, #tpu.memory_space<vmem>>, vector<32x32xf32>,
    } else {
    }
    %c0 = arith.constant 0 : index
    %c0_1 = arith.constant 0 : index
    %3 = vector.load %arg33[%c0, %c0_1] : memref<2x32xf32, #tpu.memory_space<vmem>>, vector<2x32xf32>
    %c0_2 = arith.constant 0 : index
    %c0_3 = arith.constant 0 : index
    %4 = vector.load %arg34[%c0_2, %c0_3] : memref<2x32xf32, #tpu.memory_space<vmem>>, vector<2x32xf32>
    %c0_4 = arith.constant 0 : index
    %c0_5 = arith.constant 0 : index
    %c0_6 = arith.constant 0 : index
    %5 = vector.load %arg2[%c0_4, %c0_5, %c0_6] : memref<2x8x32xf32, #tpu.memory_space<vmem>>, vector<2x8x32xf32>
    %c0_7 = arith.constant 0 : index
    %c0_8 = arith.constant 0 : index
    %6 = vector.load %arg35[%c0_7, %c0_8] : memref<2x32xf32, #tpu.memory_space<vmem>>, vector<2x32xf32>
    %7 = arith.index_cast %arg1 : i32 to index
    %c0_9 = arith.constant 0 : index
    %c0_10 = arith.constant 0 : index
    %8 = vector.load %arg10[%7, %c0_9, %c0_10] : memref<4x32x32xf32, #tpu.memory_space<vmem>>, vector<1x32x32xf32>
    %9 = vector.shape_cast %8 : vector<1x32x32xf32> to vector<32x32xf32>
    %cst = arith.constant dense<0.000000e+00> : vector<2x32xf32>
    %10 = tpu.matmul %6, %9, %cst {dimension_numbers = #tpu.dot_dimension_numbers<[1], [0], [0], [1], [0, 0, 1, 1], [], []>} : vector<2x32xf32>, vector<32x32xf32>, vector<2x32xf32> -> vector<2x32xf32>
    %11 = arith.index_cast %arg1 : i32 to index
    %c0_11 = arith.constant 0 : index
    %c0_12 = arith.constant 0 : index
    %12 = vector.load %arg11[%11, %c0_11, %c0_12] : memref<4x1x32xf32, #tpu.memory_space<vmem>>, vector<1x1x32xf32>
    %13 = vector.shape_cast %12 : vector<1x1x32xf32> to vector<1x32xf32>
    %14 = vector.broadcast %13 : vector<1x32xf32> to vector<2x32xf32>
    %15 = arith.addf %10, %14 : vector<2x32xf32>
    %c0_13 = arith.constant 0 : index
    %c0_14 = arith.constant 0 : index
    %16 = vector.load %arg12[%c0_13, %c0_14] : memref<32x32xf32, #tpu.memory_space<vmem>>, vector<32x32xf32>
    %cst_15 = arith.constant dense<0.000000e+00> : vector<2x32xf32>
    %17 = tpu.matmul %3, %16, %cst_15 {dimension_numbers = #tpu.dot_dimension_numbers<[1], [0], [0], [1], [0, 0, 1, 1], [], []>} : vector<2x32xf32>, vector<32x32xf32>, vector<2x32xf32> -> vector<2x32xf32>
    %c0_16 = arith.constant 0 : index
    %c0_17 = arith.constant 0 : index
    %18 = vector.load %arg13[%c0_16, %c0_17] : memref<32x32xf32, #tpu.memory_space<vmem>>, vector<32x32xf32>
    %cst_18 = arith.constant dense<0.000000e+00> : vector<2x32xf32>
    %19 = tpu.matmul %15, %18, %cst_18 {dimension_numbers = #tpu.dot_dimension_numbers<[1], [0], [0], [1], [0, 0, 1, 1], [], []>} : vector<2x32xf32>, vector<32x32xf32>, vector<2x32xf32> -> vector<2x32xf32>
    %20 = arith.addf %17, %19 : vector<2x32xf32>
    %c0_19 = arith.constant 0 : index
    %c0_20 = arith.constant 0 : index
    %21 = vector.load %arg14[%c0_19, %c0_20] : memref<1x32xf32, #tpu.memory_space<vmem>>, vector<1x32xf32>
    %22 = vector.broadcast %21 : vector<1x32xf32> to vector<2x32xf32>
    %23 = arith.addf %20, %22 : vector<2x32xf32>
    %c0_21 = arith.constant 0 : index
    %c0_22 = arith.constant 0 : index
    %24 = vector.load %arg15[%c0_21, %c0_22] : memref<1x32xf32, #tpu.memory_space<vmem>>, vector<1x32xf32>
    %25 = vector.broadcast %24 : vector<1x32xf32> to vector<2x32xf32>
    %26 = arith.mulf %23, %25 : vector<2x32xf32>
    %27 = vector.shape_cast %26 : vector<2x32xf32> to vector<2x1x32xf32>
    %28 = vector.broadcast %27 : vector<2x1x32xf32> to vector<2x8x32xf32>
    %29 = arith.mulf %28, %5 : vector<2x8x32xf32>
    %cst_23 = arith.constant dense<0.000000e+00> : vector<2x8xf32>
    %30 = vector.multi_reduction <add>, %29, %cst_23 [2] : vector<2x8x32xf32> to vector<2x8xf32>
    %c0_24 = arith.constant 0 : index
    %c0_25 = arith.constant 0 : index
    %31 = memref.load %arg16[%c0_24, %c0_25] : memref<1x1xf32, #tpu.memory_space<smem>>
    %32 = vector.broadcast %31 : f32 to vector<2x8xf32>
    %33 = arith.addf %30, %32 : vector<2x8xf32>
    %cst_26 = arith.constant dense<0xFF800000> : vector<2xf32>
    %34 = vector.multi_reduction <maximumf>, %33, %cst_26 [1] : vector<2x8xf32> to vector<2xf32>
    %35 = vector.shape_cast %34 : vector<2xf32> to vector<2x1xf32>
    %36 = vector.broadcast %35 : vector<2x1xf32> to vector<2x8xf32>
    %37 = arith.subf %33, %36 : vector<2x8xf32>
    %38 = math.exp %37 : vector<2x8xf32>
    %cst_27 = arith.constant dense<0.000000e+00> : vector<2xf32>
    %39 = vector.multi_reduction <add>, %38, %cst_27 [1] : vector<2x8xf32> to vector<2xf32>
    %40 = vector.shape_cast %39 : vector<2xf32> to vector<2x1xf32>
    %41 = vector.broadcast %40 : vector<2x1xf32> to vector<2x8xf32>
    %42 = arith.divf %38, %41 : vector<2x8xf32>
    %43 = vector.shape_cast %42 : vector<2x8xf32> to vector<2x8x1xf32>
    %44 = vector.broadcast %43 : vector<2x8x1xf32> to vector<2x8x32xf32>
    %45 = arith.mulf %44, %5 : vector<2x8x32xf32>
    %cst_28 = arith.constant dense<0.000000e+00> : vector<2x32xf32>
    %46 = vector.multi_reduction <add>, %45, %cst_28 [1] : vector<2x8x32xf32> to vector<2x32xf32>
    %c0_29 = arith.constant 0 : index
    %c0_30 = arith.constant 0 : index
    %47 = vector.load %arg7[%c0_29, %c0_30] : memref<2x32xf32, #tpu.memory_space<vmem>>, vector<2x32xf32>
    %48 = arith.mulf %4, %47 : vector<2x32xf32>
    %c0_31 = arith.constant 0 : index
    %c0_32 = arith.constant 0 : index
    %49 = vector.load %arg17[%c0_31, %c0_32] : memref<32x32xf32, #tpu.memory_space<vmem>>, vector<32x32xf32>
    %cst_33 = arith.constant dense<0.000000e+00> : vector<2x32xf32>
    %50 = tpu.matmul %48, %49, %cst_33 {dimension_numbers = #tpu.dot_dimension_numbers<[1], [0], [0], [1], [0, 0, 1, 1], [], []>} : vector<2x32xf32>, vector<32x32xf32>, vector<2x32xf32> -> vector<2x32xf32>
    %c0_34 = arith.constant 0 : index
    %c0_35 = arith.constant 0 : index
    %51 = vector.load %arg18[%c0_34, %c0_35] : memref<1x32xf32, #tpu.memory_space<vmem>>, vector<1x32xf32>
    %52 = vector.broadcast %51 : vector<1x32xf32> to vector<2x32xf32>
    %53 = arith.addf %50, %52 : vector<2x32xf32>
    %54 = vector.shape_cast %53 : vector<2x32xf32> to vector<2x1x32xf32>
    %c0_36 = arith.constant 0 : index
    %c0_37 = arith.constant 0 : index
    %c0_38 = arith.constant 0 : index
    %55 = vector.load %arg37[%c0_36, %c0_37, %c0_38] : memref<2x16x32xf32, #tpu.memory_space<vmem>>, vector<2x16x32xf32>
    %56 = vector.broadcast %54 : vector<2x1x32xf32> to vector<2x16x32xf32>
    %57 = arith.mulf %56, %55 : vector<2x16x32xf32>
    %58 = vector.shape_cast %57 : vector<2x16x32xf32> to vector<32x32xf32>
    %c0_39 = arith.constant 0 : index
    %c0_40 = arith.constant 0 : index
    %59 = vector.load %arg21[%c0_39, %c0_40] : memref<32x32xf32, #tpu.memory_space<vmem>>, vector<32x32xf32>
    %cst_41 = arith.constant dense<0.000000e+00> : vector<32x32xf32>
    %60 = tpu.matmul %58, %59, %cst_41 {dimension_numbers = #tpu.dot_dimension_numbers<[1], [0], [0], [1], [0, 0, 1, 1], [], []>} : vector<32x32xf32>, vector<32x32xf32>, vector<32x32xf32> -> vector<32x32xf32>
    %c0_42 = arith.constant 0 : index
    %c0_43 = arith.constant 0 : index
    %61 = vector.load %arg38[%c0_42, %c0_43] : memref<32x32xf32, #tpu.memory_space<vmem>>, vector<32x32xf32>
    %62 = arith.addf %60, %61 : vector<32x32xf32>
    %cst_44 = arith.constant 0.000000e+00 : f32
    %63 = vector.broadcast %cst_44 : f32 to vector<32x32xf32>
    %64 = arith.cmpf ogt, %62, %63 : vector<32x32xf32>
    %cst_45 = arith.constant 0.000000e+00 : f32
    %65 = vector.broadcast %cst_45 : f32 to vector<32x32xf32>
    %66 = arith.minimumf %62, %65 : vector<32x32xf32>
    %67 = math.exp %66 : vector<32x32xf32>
    %cst_46 = arith.constant 1.000000e+00 : f32
    %68 = vector.broadcast %cst_46 : f32 to vector<32x32xf32>
    %69 = arith.subf %67, %68 : vector<32x32xf32>
    %70 = arith.select %64, %62, %69 : vector<32x32xi1>, vector<32x32xf32>
    %c0_47 = arith.constant 0 : index
    %c0_48 = arith.constant 0 : index
    %71 = vector.load %arg24[%c0_47, %c0_48] : memref<32x32xf32, #tpu.memory_space<vmem>>, vector<32x32xf32>
    %cst_49 = arith.constant dense<0.000000e+00> : vector<32x32xf32>
    %72 = tpu.matmul %70, %71, %cst_49 {dimension_numbers = #tpu.dot_dimension_numbers<[1], [0], [0], [1], [0, 0, 1, 1], [], []>} : vector<32x32xf32>, vector<32x32xf32>, vector<32x32xf32> -> vector<32x32xf32>
    %c0_50 = arith.constant 0 : index
    %c0_51 = arith.constant 0 : index
    %73 = vector.load %arg25[%c0_50, %c0_51] : memref<1x32xf32, #tpu.memory_space<vmem>>, vector<1x32xf32>
    %74 = vector.broadcast %73 : vector<1x32xf32> to vector<32x32xf32>
    %75 = arith.addf %72, %74 : vector<32x32xf32>
    %76 = vector.shape_cast %75 : vector<32x32xf32> to vector<2x16x32xf32>
    %77 = vector.shape_cast %46 : vector<2x32xf32> to vector<2x1x32xf32>
    %78 = vector.broadcast %77 : vector<2x1x32xf32> to vector<2x16x32xf32>
    %79 = arith.mulf %76, %78 : vector<2x16x32xf32>
    %cst_52 = arith.constant 0.000000e+00 : f32
    %80 = vector.broadcast %cst_52 : f32 to vector<2x16x32xf32>
    %81 = arith.cmpf ogt, %79, %80 : vector<2x16x32xf32>
    %cst_53 = arith.constant 0.000000e+00 : f32
    %82 = vector.broadcast %cst_53 : f32 to vector<2x16x32xf32>
    %83 = arith.minimumf %79, %82 : vector<2x16x32xf32>
    %84 = math.exp %83 : vector<2x16x32xf32>
    %cst_54 = arith.constant 1.000000e+00 : f32
    %85 = vector.broadcast %cst_54 : f32 to vector<2x16x32xf32>
    %86 = arith.subf %84, %85 : vector<2x16x32xf32>
    %87 = arith.select %81, %79, %86 : vector<2x16x32xi1>, vector<2x16x32xf32>
    %c0_55 = arith.constant 0 : index
    %c0_56 = arith.constant 0 : index
    %88 = vector.load %arg26[%c0_55, %c0_56] : memref<1x32xf32, #tpu.memory_space<vmem>>, vector<1x32xf32>
    %89 = vector.shape_cast %88 : vector<1x32xf32> to vector<1x1x32xf32>
    %90 = vector.broadcast %89 : vector<1x1x32xf32> to vector<2x16x32xf32>
    %91 = arith.mulf %87, %90 : vector<2x16x32xf32>
    %cst_57 = arith.constant dense<0.000000e+00> : vector<2x16xf32>
    %92 = vector.multi_reduction <add>, %91, %cst_57 [2] : vector<2x16x32xf32> to vector<2x16xf32>
    %c0_58 = arith.constant 0 : index
    %c0_59 = arith.constant 0 : index
    %93 = memref.load %arg27[%c0_58, %c0_59] : memref<1x1xf32, #tpu.memory_space<smem>>
    %94 = vector.broadcast %93 : f32 to vector<2x16xf32>
    %95 = arith.addf %92, %94 : vector<2x16xf32>
    %cst_60 = arith.constant dense<0xFF800000> : vector<2xf32>
    %96 = vector.multi_reduction <maximumf>, %95, %cst_60 [1] : vector<2x16xf32> to vector<2xf32>
    %97 = vector.shape_cast %96 : vector<2xf32> to vector<2x1xf32>
    %98 = vector.broadcast %97 : vector<2x1xf32> to vector<2x16xf32>
    %99 = arith.subf %95, %98 : vector<2x16xf32>
    %100 = math.exp %99 : vector<2x16xf32>
    %cst_61 = arith.constant dense<0.000000e+00> : vector<2xf32>
    %101 = vector.multi_reduction <add>, %100, %cst_61 [1] : vector<2x16xf32> to vector<2xf32>
    %102 = vector.shape_cast %101 : vector<2xf32> to vector<2x1xf32>
    %103 = vector.broadcast %102 : vector<2x1xf32> to vector<2x16xf32>
    %104 = arith.divf %100, %103 : vector<2x16xf32>
    %105 = vector.shape_cast %104 : vector<2x16xf32> to vector<2x16x1xf32>
    %c0_62 = arith.constant 0 : index
    %c0_63 = arith.constant 0 : index
    %c0_64 = arith.constant 0 : index
    %106 = vector.load %arg36[%c0_62, %c0_63, %c0_64] : memref<2x16x32xf32, #tpu.memory_space<vmem>>, vector<2x16x32xf32>
    %107 = vector.broadcast %105 : vector<2x16x1xf32> to vector<2x16x32xf32>
    %108 = arith.mulf %107, %106 : vector<2x16x32xf32>
    %cst_65 = arith.constant dense<0.000000e+00> : vector<2x32xf32>
    %109 = vector.multi_reduction <add>, %108, %cst_65 [1] : vector<2x16x32xf32> to vector<2x32xf32>
    %c0_66 = arith.constant 0 : index
    %c0_67 = arith.constant 0 : index
    %110 = vector.load %arg28[%c0_66, %c0_67] : memref<32x32xf32, #tpu.memory_space<vmem>>, vector<32x32xf32>
    %cst_68 = arith.constant dense<0.000000e+00> : vector<2x32xf32>
    %111 = tpu.matmul %109, %110, %cst_68 {dimension_numbers = #tpu.dot_dimension_numbers<[1], [0], [0], [1], [0, 0, 1, 1], [], []>} : vector<2x32xf32>, vector<32x32xf32>, vector<2x32xf32> -> vector<2x32xf32>
    %c0_69 = arith.constant 0 : index
    %c0_70 = arith.constant 0 : index
    %112 = vector.load %arg29[%c0_69, %c0_70] : memref<32x32xf32, #tpu.memory_space<vmem>>, vector<32x32xf32>
    %cst_71 = arith.constant dense<0.000000e+00> : vector<2x32xf32>
    %113 = tpu.matmul %4, %112, %cst_71 {dimension_numbers = #tpu.dot_dimension_numbers<[1], [0], [0], [1], [0, 0, 1, 1], [], []>} : vector<2x32xf32>, vector<32x32xf32>, vector<2x32xf32> -> vector<2x32xf32>
    %114 = arith.addf %111, %113 : vector<2x32xf32>
    %c0_72 = arith.constant 0 : index
    %c0_73 = arith.constant 0 : index
    %115 = vector.load %arg30[%c0_72, %c0_73] : memref<1x32xf32, #tpu.memory_space<vmem>>, vector<1x32xf32>
    %116 = vector.broadcast %115 : vector<1x32xf32> to vector<2x32xf32>
    %117 = arith.addf %114, %116 : vector<2x32xf32>
    %c0_74 = arith.constant 0 : index
    %c0_75 = arith.constant 0 : index
    %118 = vector.load %arg33[%c0_74, %c0_75] : memref<2x32xf32, #tpu.memory_space<vmem>>, vector<2x32xf32>
    tpu.vector_store %arg33[%c0_74, %c0_75], %46 {strides = array<i32>} : memref<2x32xf32, #tpu.memory_space<vmem>>, vector<2x32xf32>,
    %c0_76 = arith.constant 0 : index
    %c0_77 = arith.constant 0 : index
    %119 = vector.load %arg34[%c0_76, %c0_77] : memref<2x32xf32, #tpu.memory_space<vmem>>, vector<2x32xf32>
    tpu.vector_store %arg34[%c0_76, %c0_77], %117 {strides = array<i32>} : memref<2x32xf32, #tpu.memory_space<vmem>>, vector<2x32xf32>,
    %c3_i32 = arith.constant 3 : i32
    %120 = arith.cmpi eq, %arg1, %c3_i32 : i32
    %121 = arith.extui %120 : i1 to i32
    %c0_i32_78 = arith.constant 0 : i32
    %122 = arith.cmpi ne, %121, %c0_i32_78 : i32
    scf.if %122 {
      %c0_79 = arith.constant 0 : index
      %c0_80 = arith.constant 0 : index
      %123 = vector.load %arg31[%c0_79, %c0_80] : memref<2x32xf32, #tpu.memory_space<vmem>>, vector<2x32xf32>
      tpu.vector_store %arg31[%c0_79, %c0_80], %46 {strides = array<i32>} : memref<2x32xf32, #tpu.memory_space<vmem>>, vector<2x32xf32>,
      %c0_81 = arith.constant 0 : index
      %c0_82 = arith.constant 0 : index
      %124 = vector.load %arg32[%c0_81, %c0_82] : memref<2x32xf32, #tpu.memory_space<vmem>>, vector<2x32xf32>
      tpu.vector_store %arg32[%c0_81, %c0_82], %117 {strides = array<i32>} : memref<2x32xf32, #tpu.memory_space<vmem>>, vector<2x32xf32>,
    } else {
    }
    return
  }
  func.func @transform_0(%arg0: i32, %arg1: i32) -> (i32, i32, i32) {
    %c0_i32 = arith.constant 0 : i32
    %c0_i32_0 = arith.constant 0 : i32
    %c0_i32_1 = arith.constant 0 : i32
    return %arg0, %c0_i32, %c0_i32_0 : i32, i32, i32
  }
  func.func @transform_1(%arg0: i32, %arg1: i32) -> (i32, i32) {
    %c0_i32 = arith.constant 0 : i32
    %c0_i32_0 = arith.constant 0 : i32
    return %arg0, %c0_i32 : i32, i32
  }
  func.func @transform_2(%arg0: i32, %arg1: i32) -> (i32, i32, i32) {
    %c0_i32 = arith.constant 0 : i32
    %c0_i32_0 = arith.constant 0 : i32
    %c0_i32_1 = arith.constant 0 : i32
    return %arg0, %c0_i32, %c0_i32_0 : i32, i32, i32
  }
  func.func @transform_3(%arg0: i32, %arg1: i32) -> (i32, i32) {
    %c0_i32 = arith.constant 0 : i32
    %c0_i32_0 = arith.constant 0 : i32
    return %arg0, %c0_i32 : i32, i32
  }
  func.func @transform_4(%arg0: i32, %arg1: i32) -> (i32, i32) {
    %c0_i32 = arith.constant 0 : i32
    %c0_i32_0 = arith.constant 0 : i32
    return %arg0, %c0_i32 : i32, i32
  }
  func.func @transform_5(%arg0: i32, %arg1: i32) -> (i32, i32) {
    %c0_i32 = arith.constant 0 : i32
    %c0_i32_0 = arith.constant 0 : i32
    return %arg0, %c0_i32 : i32, i32
  }
  func.func @transform_6(%arg0: i32, %arg1: i32) -> (i32, i32) {
    %c0_i32 = arith.constant 0 : i32
    %c0_i32_0 = arith.constant 0 : i32
    %c0_i32_1 = arith.constant 0 : i32
    return %c0_i32, %c0_i32_0 : i32, i32
  }
  func.func @transform_7(%arg0: i32, %arg1: i32) -> (i32, i32) {
    %c0_i32 = arith.constant 0 : i32
    %c0_i32_0 = arith.constant 0 : i32
    %c0_i32_1 = arith.constant 0 : i32
    return %c0_i32, %c0_i32_0 : i32, i32
  }
  func.func @transform_8(%arg0: i32, %arg1: i32) -> (i32, i32, i32) {
    %c0_i32 = arith.constant 0 : i32
    %c0_i32_0 = arith.constant 0 : i32
    %c0_i32_1 = arith.constant 0 : i32
    %c0_i32_2 = arith.constant 0 : i32
    return %c0_i32, %c0_i32_0, %c0_i32_1 : i32, i32, i32
  }
  func.func @transform_9(%arg0: i32, %arg1: i32) -> (i32, i32, i32) {
    %c0_i32 = arith.constant 0 : i32
    %c0_i32_0 = arith.constant 0 : i32
    %c0_i32_1 = arith.constant 0 : i32
    %c0_i32_2 = arith.constant 0 : i32
    return %c0_i32, %c0_i32_0, %c0_i32_1 : i32, i32, i32
  }
  func.func @transform_10(%arg0: i32, %arg1: i32) -> (i32, i32) {
    %c0_i32 = arith.constant 0 : i32
    %c0_i32_0 = arith.constant 0 : i32
    %c0_i32_1 = arith.constant 0 : i32
    return %c0_i32, %c0_i32_0 : i32, i32
  }
  func.func @transform_11(%arg0: i32, %arg1: i32) -> (i32, i32) {
    %c0_i32 = arith.constant 0 : i32
    %c0_i32_0 = arith.constant 0 : i32
    %c0_i32_1 = arith.constant 0 : i32
    return %c0_i32, %c0_i32_0 : i32, i32
  }
  func.func @transform_12(%arg0: i32, %arg1: i32) -> (i32, i32) {
    %c0_i32 = arith.constant 0 : i32
    %c0_i32_0 = arith.constant 0 : i32
    %c0_i32_1 = arith.constant 0 : i32
    return %c0_i32, %c0_i32_0 : i32, i32
  }
  func.func @transform_13(%arg0: i32, %arg1: i32) -> (i32, i32) {
    %c0_i32 = arith.constant 0 : i32
    %c0_i32_0 = arith.constant 0 : i32
    %c0_i32_1 = arith.constant 0 : i32
    return %c0_i32, %c0_i32_0 : i32, i32
  }
  func.func @transform_14(%arg0: i32, %arg1: i32) -> (i32, i32) {
    %c0_i32 = arith.constant 0 : i32
    %c0_i32_0 = arith.constant 0 : i32
    %c0_i32_1 = arith.constant 0 : i32
    return %c0_i32, %c0_i32_0 : i32, i32
  }
  func.func @transform_15(%arg0: i32, %arg1: i32) -> (i32, i32) {
    %c0_i32 = arith.constant 0 : i32
    %c0_i32_0 = arith.constant 0 : i32
    %c0_i32_1 = arith.constant 0 : i32
    return %c0_i32, %c0_i32_0 : i32, i32
  }
  func.func @transform_16(%arg0: i32, %arg1: i32) -> (i32, i32) {
    %c0_i32 = arith.constant 0 : i32
    %c0_i32_0 = arith.constant 0 : i32
    %c0_i32_1 = arith.constant 0 : i32
    return %c0_i32, %c0_i32_0 : i32, i32
  }
  func.func @transform_17(%arg0: i32, %arg1: i32) -> (i32, i32) {
    %c0_i32 = arith.constant 0 : i32
    %c0_i32_0 = arith.constant 0 : i32
    %c0_i32_1 = arith.constant 0 : i32
    return %c0_i32, %c0_i32_0 : i32, i32
  }
  func.func @transform_18(%arg0: i32, %arg1: i32) -> (i32, i32) {
    %c0_i32 = arith.constant 0 : i32
    %c0_i32_0 = arith.constant 0 : i32
    %c0_i32_1 = arith.constant 0 : i32
    return %c0_i32, %c0_i32_0 : i32, i32
  }
  func.func @transform_19(%arg0: i32, %arg1: i32) -> (i32, i32) {
    %c0_i32 = arith.constant 0 : i32
    %c0_i32_0 = arith.constant 0 : i32
    %c0_i32_1 = arith.constant 0 : i32
    return %c0_i32, %c0_i32_0 : i32, i32
  }
  func.func @transform_20(%arg0: i32, %arg1: i32) -> (i32, i32) {
    %c0_i32 = arith.constant 0 : i32
    %c0_i32_0 = arith.constant 0 : i32
    %c0_i32_1 = arith.constant 0 : i32
    return %c0_i32, %c0_i32_0 : i32, i32
  }
  func.func @transform_21(%arg0: i32, %arg1: i32) -> (i32, i32) {
    %c0_i32 = arith.constant 0 : i32
    %c0_i32_0 = arith.constant 0 : i32
    %c0_i32_1 = arith.constant 0 : i32
    return %c0_i32, %c0_i32_0 : i32, i32
  }
  func.func @transform_22(%arg0: i32, %arg1: i32) -> (i32, i32) {
    %c0_i32 = arith.constant 0 : i32
    %c0_i32_0 = arith.constant 0 : i32
    %c0_i32_1 = arith.constant 0 : i32
    return %c0_i32, %c0_i32_0 : i32, i32
  }
  func.func @transform_23(%arg0: i32, %arg1: i32) -> (i32, i32) {
    %c0_i32 = arith.constant 0 : i32
    %c0_i32_0 = arith.constant 0 : i32
    %c0_i32_1 = arith.constant 0 : i32
    return %c0_i32, %c0_i32_0 : i32, i32
  }
  func.func @transform_24(%arg0: i32, %arg1: i32) -> (i32, i32) {
    %c0_i32 = arith.constant 0 : i32
    %c0_i32_0 = arith.constant 0 : i32
    %c0_i32_1 = arith.constant 0 : i32
    return %c0_i32, %c0_i32_0 : i32, i32
  }
  func.func @transform_25(%arg0: i32, %arg1: i32) -> (i32, i32) {
    %c0_i32 = arith.constant 0 : i32
    %c0_i32_0 = arith.constant 0 : i32
    %c0_i32_1 = arith.constant 0 : i32
    return %c0_i32, %c0_i32_0 : i32, i32
  }
  func.func @transform_26(%arg0: i32, %arg1: i32) -> (i32, i32) {
    %c0_i32 = arith.constant 0 : i32
    %c0_i32_0 = arith.constant 0 : i32
    %c0_i32_1 = arith.constant 0 : i32
    return %c0_i32, %c0_i32_0 : i32, i32
  }
  func.func @transform_27(%arg0: i32, %arg1: i32) -> (i32, i32) {
    %c0_i32 = arith.constant 0 : i32
    %c0_i32_0 = arith.constant 0 : i32
    %c0_i32_1 = arith.constant 0 : i32
    return %c0_i32, %c0_i32_0 : i32, i32
  }
  func.func @transform_28(%arg0: i32, %arg1: i32) -> (i32, i32) {
    %c0_i32 = arith.constant 0 : i32
    %c0_i32_0 = arith.constant 0 : i32
    %c0_i32_1 = arith.constant 0 : i32
    return %c0_i32, %c0_i32_0 : i32, i32
  }
  func.func @transform_29(%arg0: i32, %arg1: i32) -> (i32, i32) {
    %c0_i32 = arith.constant 0 : i32
    %c0_i32_0 = arith.constant 0 : i32
    return %arg0, %c0_i32 : i32, i32
  }
  func.func @transform_30(%arg0: i32, %arg1: i32) -> (i32, i32) {
    %c0_i32 = arith.constant 0 : i32
    %c0_i32_0 = arith.constant 0 : i32
    return %arg0, %c0_i32 : i32, i32
  }
}

</mosaic_0001>

<llo_original>
// kernel: tpu_custom_call.1
$region0: #{tpu_custom_call.1}
  #allocation0 [shape = 'u32[]', space=smem, size = 0x4, offset = 0x4, fixed_abs, tag = 'smem constant byte address 0x4 - core index']
  #allocation1 [shape = 'u32[72,128]{1,0:T(1,128)}', space=vmem, size = 0x9000, scoped, tag = 'internal scratch']
  #allocation2 [shape = 'f32[2,32]{1,0:T(2,128)}', space=vmem, size = 0x400, scoped, tag = 'scratch operand']
  #allocation3 [shape = 'f32[2,32]{1,0:T(2,128)}', space=vmem, size = 0x400, scoped, tag = 'scratch operand']
  #allocation4 [shape = 'f32[2,32]{1,0:T(2,128)}', space=vmem, size = 0x400, scoped, tag = 'scratch operand']
  #allocation5 [shape = 'f32[2,16,32]{2,1,0:T(8,128)}', space=vmem, size = 0x4000, scoped, tag = 'scratch operand']
  #allocation6 [shape = 'f32[2,16,32]{2,1,0:T(8,128)}', space=vmem, size = 0x4000, scoped, tag = 'scratch operand']
  #allocation7 [shape = 'f32[32,32]{1,0:T(8,128)}', space=vmem, size = 0x4000, scoped, tag = 'scratch operand']
  #allocation8 [shape = 'f32[1,1]{1,0:T(1,128)S(6)}', space=smem, size = 0x200, scoped, tag = 'scoped memory for tpu_custom_call.1']
  #allocation9 [shape = 'f32[1,1]{1,0:T(1,128)S(6)}', space=smem, size = 0x200, scoped, tag = 'scoped memory for tpu_custom_call.1']
  %s0 = inlined_call_operand.smem [shape: u32[31], index: -1, kind: input, shape index: {}]
  %s1 = sld [smem:[%s0]]
  %s2 = scalar_lea.smem %s0, 1
  %s3 = sld [smem:[%s2]]
  %s4 = scalar_lea.smem %s0, 2
  %s5 = sld [smem:[%s4]]
  %s6 = scalar_lea.smem %s0, 3
  %s7 = sld [smem:[%s6]]
  %s8 = scalar_lea.smem %s0, 4
  %s9 = sld [smem:[%s8]]
  %s10 = scalar_lea.smem %s0, 5
  %s11 = sld [smem:[%s10]]
  %s12 = scalar_lea.smem %s0, 6
  %s13 = sld [smem:[%s12]]
  %s14 = scalar_lea.smem %s0, 7
  %s15 = sld [smem:[%s14]]
  %s16 = scalar_lea.smem %s0, 8
  %s17 = sld [smem:[%s16]]
  %s18 = scalar_lea.smem %s0, 9
  %s19 = sld [smem:[%s18]]
  %s20 = scalar_lea.smem %s0, 10
  %s21 = sld [smem:[%s20]]
  %s22 = scalar_lea.smem %s0, 11
  %s23 = sld [smem:[%s22]]
  %s24 = scalar_lea.smem %s0, 12
  %s25 = sld [smem:[%s24]]
  %s26 = scalar_lea.smem %s0, 13
  %s27 = sld [smem:[%s26]]
  %s28 = scalar_lea.smem %s0, 14
  %s29 = sld [smem:[%s28]]
  %s30 = scalar_lea.smem %s0, 15
  %s31 = sld [smem:[%s30]]
  %s32 = scalar_lea.smem %s0, 16
  %s33 = sld [smem:[%s32]]
  %s34 = scalar_lea.smem %s0, 17
  %s35 = sld [smem:[%s34]]
  %s36 = scalar_lea.smem %s0, 18
  %s37 = sld [smem:[%s36]]
  %s38 = scalar_lea.smem %s0, 19
  %s39 = sld [smem:[%s38]]
  %s40 = scalar_lea.smem %s0, 20
  %s41 = sld [smem:[%s40]]
  %s42 = scalar_lea.smem %s0, 21
  %s43 = sld [smem:[%s42]]
  %s44 = scalar_lea.smem %s0, 22
  %s45 = sld [smem:[%s44]]
  %s46 = scalar_lea.smem %s0, 23
  %s47 = sld [smem:[%s46]]
  %s48 = scalar_lea.smem %s0, 24
  %s49 = sld [smem:[%s48]]
  %s50 = scalar_lea.smem %s0, 25
  %s51 = sld [smem:[%s50]]
  %s52 = scalar_lea.smem %s0, 26
  %s53 = sld [smem:[%s52]]
  %s54 = scalar_lea.smem %s0, 27
  %s55 = sld [smem:[%s54]]
  %s56 = scalar_lea.smem %s0, 28
  %s57 = sld [smem:[%s56]]
  %s58 = scalar_lea.smem %s0, 29
  %s59 = sld [smem:[%s58]]
  %s60 = scalar_lea.smem %s0, 30
  %s61 = sld [smem:[%s60]]
  %62 = xla_tuple %s59, %s61
  %s63 = sld [smem:[#allocation0]]
  $region213: #{tpu_custom_call.1} parent=0
    _
  %s65 = ssub.s32 1, %s63
  %s66 = scalar_select 0, %s65, %s63
  %67 = sst [smem:[#allocation8]] %s29
  %68 = sst [smem:[#allocation9]] %s51
  $region1: #{tpu_custom_call.1} parent=0
    #allocation10 [shape = 'u8[8192]{0}', space=vmem, size = 0x2000, scoped, tag = 'input window, operand 0, single buffered']
    #allocation11 [shape = 's32[2]{0}', space=sflag, size = 0x8, scoped, tag = 'scoped memory for tpu_custom_call.1']
    #allocation12 [shape = 's32[2]{0}', space=sflag, size = 0x8, scoped, tag = 'scoped memory for tpu_custom_call.1']
    #allocation13 [shape = 'u8[1024]{0}', space=vmem, size = 0x400, scoped, tag = 'input window, operand 1, single buffered']
    #allocation14 [shape = 's32[1]{0}', space=sflag, size = 0x4, scoped, tag = 'scoped memory for tpu_custom_call.1']
    #allocation15 [shape = 'u8[1024]{0}', space=vmem, size = 0x400, scoped, tag = 'input window, operand 3, single buffered']
    #allocation16 [shape = 'u8[1024]{0}', space=vmem, size = 0x400, scoped, tag = 'input window, operand 5, single buffered']
    #allocation17 [shape = 's32[1]{0}', space=sflag, size = 0x4, scoped, tag = 'scoped memory for tpu_custom_call.1']
    #allocation18 [shape = 'u8[65536]{0}', space=vmem, size = 0x10000, scoped, tag = 'input window, operand 8, single buffered']
    #allocation19 [shape = 'u8[16384]{0}', space=vmem, size = 0x4000, scoped, tag = 'input window, operand 15, single buffered']
    #allocation20 [shape = 's32[1]{0}', space=sflag, size = 0x4, scoped, tag = 'scoped memory for tpu_custom_call.1']
    #allocation21 [shape = 'u8[16384]{0}', space=vmem, size = 0x4000, scoped, tag = 'input window, operand 17, single buffered']
    #allocation22 [shape = 'u8[16384]{0}', space=vmem, size = 0x4000, scoped, tag = 'input window, operand 19, single buffered']
    #allocation23 [shape = 's32[1]{0}', space=sflag, size = 0x4, scoped, tag = 'scoped memory for tpu_custom_call.1']
    #allocation24 [shape = 'u8[16384]{0}', space=vmem, size = 0x4000, scoped, tag = 'input window, operand 20, single buffered']
    #allocation25 [shape = 'u8[16384]{0}', space=vmem, size = 0x4000, scoped, tag = 'input window, operand 22, single buffered']
    #allocation26 [shape = 's32[1]{0}', space=sflag, size = 0x4, scoped, tag = 'scoped memory for tpu_custom_call.1']
    #allocation27 [shape = 'u8[16384]{0}', space=vmem, size = 0x4000, scoped, tag = 'input window, operand 26, single buffered']
    #allocation28 [shape = 'u8[16384]{0}', space=vmem, size = 0x4000, scoped, tag = 'input window, operand 27, single buffered']
    #allocation29 [shape = 's32[1]{0}', space=sflag, size = 0x4, scoped, tag = 'scoped memory for tpu_custom_call.1']
    #allocation30 [shape = 'u8[1024]{0}', space=vmem, size = 0x400, scoped, tag = 'output window, operand 0, single buffered']
    #allocation31 [shape = 'u8[1024]{0}', space=vmem, size = 0x400, scoped, tag = 'output window, operand 1, single buffered']
    #allocation32 [shape = 's32[1]{0}', space=sflag, size = 0x4, scoped, tag = 'scoped memory for tpu_custom_call.1']
    %69 = vsyncpa [#allocation11], 0
    %70 = vsyncpa [#allocation14], 0
    %71 = vsyncpa [#allocation17], 0
    %72 = vsyncpa [#allocation20], 0
    %73 = vsyncpa [#allocation23], 0
    %74 = vsyncpa [#allocation26], 0
    %75 = vsyncpa [#allocation29], 0
    %76 = vsyncpa [#allocation12], 0
    %77 = vsyncpa [#allocation32], 0
    loop: start=0, step=1, limit=6
    $region2: #{tpu_custom_call.1} parent=1 // loop_pre_header
      _
    $region3: #{tpu_custom_call.1} parent=1 // loop_header
      %s79 = sphi 0, %s83
      %p80 = scmp.ge.s32.totalorder %s79, 6
      %s86 = sphi 0, %s98
      %s87 = sphi 0, %s94
      %s88 = sphi 0, %s86
      %s89 = sphi 0, %s87
      %s90 = sphi 0, %s88
      %s91 = sphi 0, %s89
      %s101 = sphi 0, %s103
      %s104 = sphi 0, %s101
      %s105 = sphi 0, %s104
      %s121 = sphi 0, %s105
      %s127 = sphi 0, %s129
      %s130 = sphi 0, %s127
      %s131 = sphi 0, %s130
      %s147 = sphi 0, %s131
      %s153 = sphi 0, %s155
      %s156 = sphi 0, %s153
      %s157 = sphi 0, %s156
      %s173 = sphi 0, %s157
      %s179 = sphi 0, %s181
      %s182 = sphi 0, %s179
      %s183 = sphi 0, %s182
      %s199 = sphi 0, %s183
      %s205 = sphi 0, %s207
      %s208 = sphi 0, %s205
      %s209 = sphi 0, %s208
      %s225 = sphi 0, %s209
      %s231 = sphi 0, %s233
      %s234 = sphi 0, %s231
      %s235 = sphi 0, %s234
      %s251 = sphi 0, %s235
      %s255 = sphi 0, %s255
      %s257 = sphi 0, %s255
      %s258 = sphi 0, %s257
      %s272 = sphi 0, %s258
      %s276 = sphi 0, %s276
      %s278 = sphi 0, %s276
      %s279 = sphi 0, %s278
      %s293 = sphi 0, %s279
      %s297 = sphi 0, %s297
      %s299 = sphi 0, %s297
      %s300 = sphi 0, %s299
      %s314 = sphi 0, %s300
      %s318 = sphi 0, %s318
      %s320 = sphi 0, %s318
      %s321 = sphi 0, %s320
      %s335 = sphi 0, %s321
      %s339 = sphi 0, %s339
      %s341 = sphi 0, %s339
      %s342 = sphi 0, %s341
      %s356 = sphi 0, %s342
      %s360 = sphi 0, %s360
      %s362 = sphi 0, %s360
      %s363 = sphi 0, %s362
      %s377 = sphi 0, %s363
      %s381 = sphi 0, %s381
      %s383 = sphi 0, %s381
      %s384 = sphi 0, %s383
      %s398 = sphi 0, %s384
      %s402 = sphi 0, %s402
      %s404 = sphi 0, %s402
      %s405 = sphi 0, %s404
      %s419 = sphi 0, %s405
      %s423 = sphi 0, %s423
      %s425 = sphi 0, %s423
      %s426 = sphi 0, %s425
      %s440 = sphi 0, %s426
      %s444 = sphi 0, %s444
      %s446 = sphi 0, %s444
      %s447 = sphi 0, %s446
      %s461 = sphi 0, %s447
      %s465 = sphi 0, %s465
      %s467 = sphi 0, %s465
      %s468 = sphi 0, %s467
      %s482 = sphi 0, %s468
      %s486 = sphi 0, %s486
      %s488 = sphi 0, %s486
      %s489 = sphi 0, %s488
      %s503 = sphi 0, %s489
      %s507 = sphi 0, %s507
      %s509 = sphi 0, %s507
      %s510 = sphi 0, %s509
      %s524 = sphi 0, %s510
      %s528 = sphi 0, %s528
      %s530 = sphi 0, %s528
      %s531 = sphi 0, %s530
      %s545 = sphi 0, %s531
      %s549 = sphi 0, %s549
      %s551 = sphi 0, %s549
      %s552 = sphi 0, %s551
      %s566 = sphi 0, %s552
      %s570 = sphi 0, %s570
      %s572 = sphi 0, %s570
      %s573 = sphi 0, %s572
      %s587 = sphi 0, %s573
      %s591 = sphi 0, %s591
      %s593 = sphi 0, %s591
      %s594 = sphi 0, %s593
      %s608 = sphi 0, %s594
      %s612 = sphi 0, %s612
      %s614 = sphi 0, %s612
      %s615 = sphi 0, %s614
      %s629 = sphi 0, %s615
      %s633 = sphi 0, %s633
      %s635 = sphi 0, %s633
      %s636 = sphi 0, %s635
      %s650 = sphi 0, %s636
      %s654 = sphi 0, %s654
      %s656 = sphi 0, %s654
      %s657 = sphi 0, %s656
      %s671 = sphi 0, %s657
      %s675 = sphi 0, %s675
      %s677 = sphi 0, %s675
      %s678 = sphi 0, %s677
      %s692 = sphi 0, %s678
      %s696 = sphi 0, %s696
      %s698 = sphi 0, %s696
      %s699 = sphi 0, %s698
      %s713 = sphi 0, %s699
      %s717 = sphi 0, %s717
      %s719 = sphi 0, %s717
      %s720 = sphi 0, %s719
      %s734 = sphi 0, %s720
      %s740 = sphi 0, %s742
      %s743 = sphi 0, %s740
      %s744 = sphi 0, %s743
      %s760 = sphi 0, %s744
      %s766 = sphi 0, %s768
      %s769 = sphi 0, %s766
      %s770 = sphi 0, %s769
      %s786 = sphi 0, %s770
    $region4: #{tpu_custom_call.1} parent=1 // loop_header_branch
      %82 = sbr.rel (%p80) target = $region8
    $region5: #{tpu_custom_call.1} parent=1 // loop_body
      %s84 = ssub.s32 %s79, 1
      %s85 = ssub.s32 %s79, 2
      %s92 = sadd.s32 1, %s87
      %p93 = scmp.ge.s32.totalorder %s92, 4
      %s94 = scalar_select %p93, 0, %s92
      %s95 = sadd.s32 1, %s86
      %s96 = scalar_select %p93, %s95, %s86
      %p97 = scmp.ge.s32.totalorder %s96, 1
      %s98 = scalar_select %p97, 0, %s96
      %s99 = ssub.s32 %s86, %s98
      %p100 = scmp.eq.s32.totalorder %s99, 0
      %s102 = sadd.s32 %s101, 1
      %s103 = scalar_select %p100, %s101, %s102
      %p106 = pneg %p100
      %p107 = scmp.eq.s32.totalorder %s79, 3
      %p108 = por %p106, %p107
      %p109 = scmp.ne.s32.totalorder %s101, %s104
      %p110 = scmp.eq.s32.totalorder %s79, 0
      %p111 = por %p109, %p110
      %p112 = scmp.ne.s32.totalorder %s101, %s104
      %p113 = scmp.eq.s32.totalorder %s84, 3
      %p114 = por %p112, %p113
      %p115 = scmp.ne.s32.totalorder %s104, %s105
      %p116 = scmp.eq.s32.totalorder %s84, 0
      %p117 = por %p115, %p116
      %p118 = scmp.ne.s32.totalorder %s104, %s105
      %p119 = scmp.eq.s32.totalorder %s85, 3
      %p120 = por %p118, %p119
      %p122 = scmp.ne.s32.totalorder %s105, %s121
      %p123 = scmp.eq.s32.totalorder %s85, 0
      %p124 = por %p122, %p123
      %s125 = ssub.s32 %s86, %s98
      %p126 = scmp.eq.s32.totalorder %s125, 0
      %s128 = sadd.s32 %s127, 1
      %s129 = scalar_select %p126, %s127, %s128
      %p132 = pneg %p126
      %p133 = scmp.eq.s32.totalorder %s79, 3
      %p134 = por %p132, %p133
      %p135 = scmp.ne.s32.totalorder %s127, %s130
      %p136 = scmp.eq.s32.totalorder %s79, 0
      %p137 = por %p135, %p136
      %p138 = scmp.ne.s32.totalorder %s127, %s130
      %p139 = scmp.eq.s32.totalorder %s84, 3
      %p140 = por %p138, %p139
      %p141 = scmp.ne.s32.totalorder %s130, %s131
      %p142 = scmp.eq.s32.totalorder %s84, 0
      %p143 = por %p141, %p142
      %p144 = scmp.ne.s32.totalorder %s130, %s131
      %p145 = scmp.eq.s32.totalorder %s85, 3
      %p146 = por %p144, %p145
      %p148 = scmp.ne.s32.totalorder %s131, %s147
      %p149 = scmp.eq.s32.totalorder %s85, 0
      %p150 = por %p148, %p149
      %s151 = ssub.s32 %s86, %s98
      %p152 = scmp.eq.s32.totalorder %s151, 0
      %s154 = sadd.s32 %s153, 1
      %s155 = scalar_select %p152, %s153, %s154
      %p158 = pneg %p152
      %p159 = scmp.eq.s32.totalorder %s79, 3
      %p160 = por %p158, %p159
      %p161 = scmp.ne.s32.totalorder %s153, %s156
      %p162 = scmp.eq.s32.totalorder %s79, 0
      %p163 = por %p161, %p162
      %p164 = scmp.ne.s32.totalorder %s153, %s156
      %p165 = scmp.eq.s32.totalorder %s84, 3
      %p166 = por %p164, %p165
      %p167 = scmp.ne.s32.totalorder %s156, %s157
      %p168 = scmp.eq.s32.totalorder %s84, 0
      %p169 = por %p167, %p168
      %p170 = scmp.ne.s32.totalorder %s156, %s157
      %p171 = scmp.eq.s32.totalorder %s85, 3
      %p172 = por %p170, %p171
      %p174 = scmp.ne.s32.totalorder %s157, %s173
      %p175 = scmp.eq.s32.totalorder %s85, 0
      %p176 = por %p174, %p175
      %s177 = ssub.s32 %s86, %s98
      %p178 = scmp.eq.s32.totalorder %s177, 0
      %s180 = sadd.s32 %s179, 1
      %s181 = scalar_select %p178, %s179, %s180
      %p184 = pneg %p178
      %p185 = scmp.eq.s32.totalorder %s79, 3
      %p186 = por %p184, %p185
      %p187 = scmp.ne.s32.totalorder %s179, %s182
      %p188 = scmp.eq.s32.totalorder %s79, 0
      %p189 = por %p187, %p188
      %p190 = scmp.ne.s32.totalorder %s179, %s182
      %p191 = scmp.eq.s32.totalorder %s84, 3
      %p192 = por %p190, %p191
      %p193 = scmp.ne.s32.totalorder %s182, %s183
      %p194 = scmp.eq.s32.totalorder %s84, 0
      %p195 = por %p193, %p194
      %p196 = scmp.ne.s32.totalorder %s182, %s183
      %p197 = scmp.eq.s32.totalorder %s85, 3
      %p198 = por %p196, %p197
      %p200 = scmp.ne.s32.totalorder %s183, %s199
      %p201 = scmp.eq.s32.totalorder %s85, 0
      %p202 = por %p200, %p201
      %s203 = ssub.s32 %s86, %s98
      %p204 = scmp.eq.s32.totalorder %s203, 0
      %s206 = sadd.s32 %s205, 1
      %s207 = scalar_select %p204, %s205, %s206
      %p210 = pneg %p204
      %p211 = scmp.eq.s32.totalorder %s79, 3
      %p212 = por %p210, %p211
      %p213 = scmp.ne.s32.totalorder %s205, %s208
      %p214 = scmp.eq.s32.totalorder %s79, 0
      %p215 = por %p213, %p214
      %p216 = scmp.ne.s32.totalorder %s205, %s208
      %p217 = scmp.eq.s32.totalorder %s84, 3
      %p218 = por %p216, %p217
      %p219 = scmp.ne.s32.totalorder %s208, %s209
      %p220 = scmp.eq.s32.totalorder %s84, 0
      %p221 = por %p219, %p220
      %p222 = scmp.ne.s32.totalorder %s208, %s209
      %p223 = scmp.eq.s32.totalorder %s85, 3
      %p224 = por %p222, %p223
      %p226 = scmp.ne.s32.totalorder %s209, %s225
      %p227 = scmp.eq.s32.totalorder %s85, 0
      %p228 = por %p226, %p227
      %s229 = ssub.s32 %s86, %s98
      %p230 = scmp.eq.s32.totalorder %s229, 0
      %s232 = sadd.s32 %s231, 1
      %s233 = scalar_select %p230, %s231, %s232
      %p236 = pneg %p230
      %p237 = scmp.eq.s32.totalorder %s79, 3
      %p238 = por %p236, %p237
      %p239 = scmp.ne.s32.totalorder %s231, %s234
      %p240 = scmp.eq.s32.totalorder %s79, 0
      %p241 = por %p239, %p240
      %p242 = scmp.ne.s32.totalorder %s231, %s234
      %p243 = scmp.eq.s32.totalorder %s84, 3
      %p244 = por %p242, %p243
      %p245 = scmp.ne.s32.totalorder %s234, %s235
      %p246 = scmp.eq.s32.totalorder %s84, 0
      %p247 = por %p245, %p246
      %p248 = scmp.ne.s32.totalorder %s234, %s235
      %p249 = scmp.eq.s32.totalorder %s85, 3
      %p250 = por %p248, %p249
      %p252 = scmp.ne.s32.totalorder %s235, %s251
      %p253 = scmp.eq.s32.totalorder %s85, 0
      %p254 = por %p252, %p253
      %s256 = sadd.s32 %s255, 1
      %p259 = scmp.eq.s32.totalorder %s79, 3
      %p260 = scmp.ne.s32.totalorder %s255, %s257
      %p261 = scmp.eq.s32.totalorder %s79, 0
      %p262 = por %p260, %p261
      %p263 = scmp.ne.s32.totalorder %s255, %s257
      %p264 = scmp.eq.s32.totalorder %s84, 3
      %p265 = por %p263, %p264
      %p266 = scmp.ne.s32.totalorder %s257, %s258
      %p267 = scmp.eq.s32.totalorder %s84, 0
      %p268 = por %p266, %p267
      %p269 = scmp.ne.s32.totalorder %s257, %s258
      %p270 = scmp.eq.s32.totalorder %s85, 3
      %p271 = por %p269, %p270
      %p273 = scmp.ne.s32.totalorder %s258, %s272
      %p274 = scmp.eq.s32.totalorder %s85, 0
      %p275 = por %p273, %p274
      %s277 = sadd.s32 %s276, 1
      %p280 = scmp.eq.s32.totalorder %s79, 3
      %p281 = scmp.ne.s32.totalorder %s276, %s278
      %p282 = scmp.eq.s32.totalorder %s79, 0
      %p283 = por %p281, %p282
      %p284 = scmp.ne.s32.totalorder %s276, %s278
      %p285 = scmp.eq.s32.totalorder %s84, 3
      %p286 = por %p284, %p285
      %p287 = scmp.ne.s32.totalorder %s278, %s279
      %p288 = scmp.eq.s32.totalorder %s84, 0
      %p289 = por %p287, %p288
      %p290 = scmp.ne.s32.totalorder %s278, %s279
      %p291 = scmp.eq.s32.totalorder %s85, 3
      %p292 = por %p290, %p291
      %p294 = scmp.ne.s32.totalorder %s279, %s293
      %p295 = scmp.eq.s32.totalorder %s85, 0
      %p296 = por %p294, %p295
      %s298 = sadd.s32 %s297, 1
      %p301 = scmp.eq.s32.totalorder %s79, 3
      %p302 = scmp.ne.s32.totalorder %s297, %s299
      %p303 = scmp.eq.s32.totalorder %s79, 0
      %p304 = por %p302, %p303
      %p305 = scmp.ne.s32.totalorder %s297, %s299
      %p306 = scmp.eq.s32.totalorder %s84, 3
      %p307 = por %p305, %p306
      %p308 = scmp.ne.s32.totalorder %s299, %s300
      %p309 = scmp.eq.s32.totalorder %s84, 0
      %p310 = por %p308, %p309
      %p311 = scmp.ne.s32.totalorder %s299, %s300
      %p312 = scmp.eq.s32.totalorder %s85, 3
      %p313 = por %p311, %p312
      %p315 = scmp.ne.s32.totalorder %s300, %s314
      %p316 = scmp.eq.s32.totalorder %s85, 0
      %p317 = por %p315, %p316
      %s319 = sadd.s32 %s318, 1
      %p322 = scmp.eq.s32.totalorder %s79, 3
      %p323 = scmp.ne.s32.totalorder %s318, %s320
      %p324 = scmp.eq.s32.totalorder %s79, 0
      %p325 = por %p323, %p324
      %p326 = scmp.ne.s32.totalorder %s318, %s320
      %p327 = scmp.eq.s32.totalorder %s84, 3
      %p328 = por %p326, %p327
      %p329 = scmp.ne.s32.totalorder %s320, %s321
      %p330 = scmp.eq.s32.totalorder %s84, 0
      %p331 = por %p329, %p330
      %p332 = scmp.ne.s32.totalorder %s320, %s321
      %p333 = scmp.eq.s32.totalorder %s85, 3
      %p334 = por %p332, %p333
      %p336 = scmp.ne.s32.totalorder %s321, %s335
      %p337 = scmp.eq.s32.totalorder %s85, 0
      %p338 = por %p336, %p337
      %s340 = sadd.s32 %s339, 1
      %p343 = scmp.eq.s32.totalorder %s79, 3
      %p344 = scmp.ne.s32.totalorder %s339, %s341
      %p345 = scmp.eq.s32.totalorder %s79, 0
      %p346 = por %p344, %p345
      %p347 = scmp.ne.s32.totalorder %s339, %s341
      %p348 = scmp.eq.s32.totalorder %s84, 3
      %p349 = por %p347, %p348
      %p350 = scmp.ne.s32.totalorder %s341, %s342
      %p351 = scmp.eq.s32.totalorder %s84, 0
      %p352 = por %p350, %p351
      %p353 = scmp.ne.s32.totalorder %s341, %s342
      %p354 = scmp.eq.s32.totalorder %s85, 3
      %p355 = por %p353, %p354
      %p357 = scmp.ne.s32.totalorder %s342, %s356
      %p358 = scmp.eq.s32.totalorder %s85, 0
      %p359 = por %p357, %p358
      %s361 = sadd.s32 %s360, 1
      %p364 = scmp.eq.s32.totalorder %s79, 3
      %p365 = scmp.ne.s32.totalorder %s360, %s362
      %p366 = scmp.eq.s32.totalorder %s79, 0
      %p367 = por %p365, %p366
      %p368 = scmp.ne.s32.totalorder %s360, %s362
      %p369 = scmp.eq.s32.totalorder %s84, 3
      %p370 = por %p368, %p369
      %p371 = scmp.ne.s32.totalorder %s362, %s363
      %p372 = scmp.eq.s32.totalorder %s84, 0
      %p373 = por %p371, %p372
      %p374 = scmp.ne.s32.totalorder %s362, %s363
      %p375 = scmp.eq.s32.totalorder %s85, 3
      %p376 = por %p374, %p375
      %p378 = scmp.ne.s32.totalorder %s363, %s377
      %p379 = scmp.eq.s32.totalorder %s85, 0
      %p380 = por %p378, %p379
      %s382 = sadd.s32 %s381, 1
      %p385 = scmp.eq.s32.totalorder %s79, 3
      %p386 = scmp.ne.s32.totalorder %s381, %s383
      %p387 = scmp.eq.s32.totalorder %s79, 0
      %p388 = por %p386, %p387
      %p389 = scmp.ne.s32.totalorder %s381, %s383
      %p390 = scmp.eq.s32.totalorder %s84, 3
      %p391 = por %p389, %p390
      %p392 = scmp.ne.s32.totalorder %s383, %s384
      %p393 = scmp.eq.s32.totalorder %s84, 0
      %p394 = por %p392, %p393
      %p395 = scmp.ne.s32.totalorder %s383, %s384
      %p396 = scmp.eq.s32.totalorder %s85, 3
      %p397 = por %p395, %p396
      %p399 = scmp.ne.s32.totalorder %s384, %s398
      %p400 = scmp.eq.s32.totalorder %s85, 0
      %p401 = por %p399, %p400
      %s403 = sadd.s32 %s402, 1
      %p406 = scmp.eq.s32.totalorder %s79, 3
      %p407 = scmp.ne.s32.totalorder %s402, %s404
      %p408 = scmp.eq.s32.totalorder %s79, 0
      %p409 = por %p407, %p408
      %p410 = scmp.ne.s32.totalorder %s402, %s404
      %p411 = scmp.eq.s32.totalorder %s84, 3
      %p412 = por %p410, %p411
      %p413 = scmp.ne.s32.totalorder %s404, %s405
      %p414 = scmp.eq.s32.totalorder %s84, 0
      %p415 = por %p413, %p414
      %p416 = scmp.ne.s32.totalorder %s404, %s405
      %p417 = scmp.eq.s32.totalorder %s85, 3
      %p418 = por %p416, %p417
      %p420 = scmp.ne.s32.totalorder %s405, %s419
      %p421 = scmp.eq.s32.totalorder %s85, 0
      %p422 = por %p420, %p421
      %s424 = sadd.s32 %s423, 1
      %p427 = scmp.eq.s32.totalorder %s79, 3
      %p428 = scmp.ne.s32.totalorder %s423, %s425
      %p429 = scmp.eq.s32.totalorder %s79, 0
      %p430 = por %p428, %p429
      %p431 = scmp.ne.s32.totalorder %s423, %s425
      %p432 = scmp.eq.s32.totalorder %s84, 3
      %p433 = por %p431, %p432
      %p434 = scmp.ne.s32.totalorder %s425, %s426
      %p435 = scmp.eq.s32.totalorder %s84, 0
      %p436 = por %p434, %p435
      %p437 = scmp.ne.s32.totalorder %s425, %s426
      %p438 = scmp.eq.s32.totalorder %s85, 3
      %p439 = por %p437, %p438
      %p441 = scmp.ne.s32.totalorder %s426, %s440
      %p442 = scmp.eq.s32.totalorder %s85, 0
      %p443 = por %p441, %p442
      %s445 = sadd.s32 %s444, 1
      %p448 = scmp.eq.s32.totalorder %s79, 3
      %p449 = scmp.ne.s32.totalorder %s444, %s446
      %p450 = scmp.eq.s32.totalorder %s79, 0
      %p451 = por %p449, %p450
      %p452 = scmp.ne.s32.totalorder %s444, %s446
      %p453 = scmp.eq.s32.totalorder %s84, 3
      %p454 = por %p452, %p453
      %p455 = scmp.ne.s32.totalorder %s446, %s447
      %p456 = scmp.eq.s32.totalorder %s84, 0
      %p457 = por %p455, %p456
      %p458 = scmp.ne.s32.totalorder %s446, %s447
      %p459 = scmp.eq.s32.totalorder %s85, 3
      %p460 = por %p458, %p459
      %p462 = scmp.ne.s32.totalorder %s447, %s461
      %p463 = scmp.eq.s32.totalorder %s85, 0
      %p464 = por %p462, %p463
      %s466 = sadd.s32 %s465, 1
      %p469 = scmp.eq.s32.totalorder %s79, 3
      %p470 = scmp.ne.s32.totalorder %s465, %s467
      %p471 = scmp.eq.s32.totalorder %s79, 0
      %p472 = por %p470, %p471
      %p473 = scmp.ne.s32.totalorder %s465, %s467
      %p474 = scmp.eq.s32.totalorder %s84, 3
      %p475 = por %p473, %p474
      %p476 = scmp.ne.s32.totalorder %s467, %s468
      %p477 = scmp.eq.s32.totalorder %s84, 0
      %p478 = por %p476, %p477
      %p479 = scmp.ne.s32.totalorder %s467, %s468
      %p480 = scmp.eq.s32.totalorder %s85, 3
      %p481 = por %p479, %p480
      %p483 = scmp.ne.s32.totalorder %s468, %s482
      %p484 = scmp.eq.s32.totalorder %s85, 0
      %p485 = por %p483, %p484
      %s487 = sadd.s32 %s486, 1
      %p490 = scmp.eq.s32.totalorder %s79, 3
      %p491 = scmp.ne.s32.totalorder %s486, %s488
      %p492 = scmp.eq.s32.totalorder %s79, 0
      %p493 = por %p491, %p492
      %p494 = scmp.ne.s32.totalorder %s486, %s488
      %p495 = scmp.eq.s32.totalorder %s84, 3
      %p496 = por %p494, %p495
      %p497 = scmp.ne.s32.totalorder %s488, %s489
      %p498 = scmp.eq.s32.totalorder %s84, 0
      %p499 = por %p497, %p498
      %p500 = scmp.ne.s32.totalorder %s488, %s489
      %p501 = scmp.eq.s32.totalorder %s85, 3
      %p502 = por %p500, %p501
      %p504 = scmp.ne.s32.totalorder %s489, %s503
      %p505 = scmp.eq.s32.totalorder %s85, 0
      %p506 = por %p504, %p505
      %s508 = sadd.s32 %s507, 1
      %p511 = scmp.eq.s32.totalorder %s79, 3
      %p512 = scmp.ne.s32.totalorder %s507, %s509
      %p513 = scmp.eq.s32.totalorder %s79, 0
      %p514 = por %p512, %p513
      %p515 = scmp.ne.s32.totalorder %s507, %s509
      %p516 = scmp.eq.s32.totalorder %s84, 3
      %p517 = por %p515, %p516
      %p518 = scmp.ne.s32.totalorder %s509, %s510
      %p519 = scmp.eq.s32.totalorder %s84, 0
      %p520 = por %p518, %p519
      %p521 = scmp.ne.s32.totalorder %s509, %s510
      %p522 = scmp.eq.s32.totalorder %s85, 3
      %p523 = por %p521, %p522
      %p525 = scmp.ne.s32.totalorder %s510, %s524
      %p526 = scmp.eq.s32.totalorder %s85, 0
      %p527 = por %p525, %p526
      %s529 = sadd.s32 %s528, 1
      %p532 = scmp.eq.s32.totalorder %s79, 3
      %p533 = scmp.ne.s32.totalorder %s528, %s530
      %p534 = scmp.eq.s32.totalorder %s79, 0
      %p535 = por %p533, %p534
      %p536 = scmp.ne.s32.totalorder %s528, %s530
      %p537 = scmp.eq.s32.totalorder %s84, 3
      %p538 = por %p536, %p537
      %p539 = scmp.ne.s32.totalorder %s530, %s531
      %p540 = scmp.eq.s32.totalorder %s84, 0
      %p541 = por %p539, %p540
      %p542 = scmp.ne.s32.totalorder %s530, %s531
      %p543 = scmp.eq.s32.totalorder %s85, 3
      %p544 = por %p542, %p543
      %p546 = scmp.ne.s32.totalorder %s531, %s545
      %p547 = scmp.eq.s32.totalorder %s85, 0
      %p548 = por %p546, %p547
      %s550 = sadd.s32 %s549, 1
      %p553 = scmp.eq.s32.totalorder %s79, 3
      %p554 = scmp.ne.s32.totalorder %s549, %s551
      %p555 = scmp.eq.s32.totalorder %s79, 0
      %p556 = por %p554, %p555
      %p557 = scmp.ne.s32.totalorder %s549, %s551
      %p558 = scmp.eq.s32.totalorder %s84, 3
      %p559 = por %p557, %p558
      %p560 = scmp.ne.s32.totalorder %s551, %s552
      %p561 = scmp.eq.s32.totalorder %s84, 0
      %p562 = por %p560, %p561
      %p563 = scmp.ne.s32.totalorder %s551, %s552
      %p564 = scmp.eq.s32.totalorder %s85, 3
      %p565 = por %p563, %p564
      %p567 = scmp.ne.s32.totalorder %s552, %s566
      %p568 = scmp.eq.s32.totalorder %s85, 0
      %p569 = por %p567, %p568
      %s571 = sadd.s32 %s570, 1
      %p574 = scmp.eq.s32.totalorder %s79, 3
      %p575 = scmp.ne.s32.totalorder %s570, %s572
      %p576 = scmp.eq.s32.totalorder %s79, 0
      %p577 = por %p575, %p576
      %p578 = scmp.ne.s32.totalorder %s570, %s572
      %p579 = scmp.eq.s32.totalorder %s84, 3
      %p580 = por %p578, %p579
      %p581 = scmp.ne.s32.totalorder %s572, %s573
      %p582 = scmp.eq.s32.totalorder %s84, 0
      %p583 = por %p581, %p582
      %p584 = scmp.ne.s32.totalorder %s572, %s573
      %p585 = scmp.eq.s32.totalorder %s85, 3
      %p586 = por %p584, %p585
      %p588 = scmp.ne.s32.totalorder %s573, %s587
      %p589 = scmp.eq.s32.totalorder %s85, 0
      %p590 = por %p588, %p589
      %s592 = sadd.s32 %s591, 1
      %p595 = scmp.eq.s32.totalorder %s79, 3
      %p596 = scmp.ne.s32.totalorder %s591, %s593
      %p597 = scmp.eq.s32.totalorder %s79, 0
      %p598 = por %p596, %p597
      %p599 = scmp.ne.s32.totalorder %s591, %s593
      %p600 = scmp.eq.s32.totalorder %s84, 3
      %p601 = por %p599, %p600
      %p602 = scmp.ne.s32.totalorder %s593, %s594
      %p603 = scmp.eq.s32.totalorder %s84, 0
      %p604 = por %p602, %p603
      %p605 = scmp.ne.s32.totalorder %s593, %s594
      %p606 = scmp.eq.s32.totalorder %s85, 3
      %p607 = por %p605, %p606
      %p609 = scmp.ne.s32.totalorder %s594, %s608
      %p610 = scmp.eq.s32.totalorder %s85, 0
      %p611 = por %p609, %p610
      %s613 = sadd.s32 %s612, 1
      %p616 = scmp.eq.s32.totalorder %s79, 3
      %p617 = scmp.ne.s32.totalorder %s612, %s614
      %p618 = scmp.eq.s32.totalorder %s79, 0
      %p619 = por %p617, %p618
      %p620 = scmp.ne.s32.totalorder %s612, %s614
      %p621 = scmp.eq.s32.totalorder %s84, 3
      %p622 = por %p620, %p621
      %p623 = scmp.ne.s32.totalorder %s614, %s615
      %p624 = scmp.eq.s32.totalorder %s84, 0
      %p625 = por %p623, %p624
      %p626 = scmp.ne.s32.totalorder %s614, %s615
      %p627 = scmp.eq.s32.totalorder %s85, 3
      %p628 = por %p626, %p627
      %p630 = scmp.ne.s32.totalorder %s615, %s629
      %p631 = scmp.eq.s32.totalorder %s85, 0
      %p632 = por %p630, %p631
      %s634 = sadd.s32 %s633, 1
      %p637 = scmp.eq.s32.totalorder %s79, 3
      %p638 = scmp.ne.s32.totalorder %s633, %s635
      %p639 = scmp.eq.s32.totalorder %s79, 0
      %p640 = por %p638, %p639
      %p641 = scmp.ne.s32.totalorder %s633, %s635
      %p642 = scmp.eq.s32.totalorder %s84, 3
      %p643 = por %p641, %p642
      %p644 = scmp.ne.s32.totalorder %s635, %s636
      %p645 = scmp.eq.s32.totalorder %s84, 0
      %p646 = por %p644, %p645
      %p647 = scmp.ne.s32.totalorder %s635, %s636
      %p648 = scmp.eq.s32.totalorder %s85, 3
      %p649 = por %p647, %p648
      %p651 = scmp.ne.s32.totalorder %s636, %s650
      %p652 = scmp.eq.s32.totalorder %s85, 0
      %p653 = por %p651, %p652
      %s655 = sadd.s32 %s654, 1
      %p658 = scmp.eq.s32.totalorder %s79, 3
      %p659 = scmp.ne.s32.totalorder %s654, %s656
      %p660 = scmp.eq.s32.totalorder %s79, 0
      %p661 = por %p659, %p660
      %p662 = scmp.ne.s32.totalorder %s654, %s656
      %p663 = scmp.eq.s32.totalorder %s84, 3
      %p664 = por %p662, %p663
      %p665 = scmp.ne.s32.totalorder %s656, %s657
      %p666 = scmp.eq.s32.totalorder %s84, 0
      %p667 = por %p665, %p666
      %p668 = scmp.ne.s32.totalorder %s656, %s657
      %p669 = scmp.eq.s32.totalorder %s85, 3
      %p670 = por %p668, %p669
      %p672 = scmp.ne.s32.totalorder %s657, %s671
      %p673 = scmp.eq.s32.totalorder %s85, 0
      %p674 = por %p672, %p673
      %s676 = sadd.s32 %s675, 1
      %p679 = scmp.eq.s32.totalorder %s79, 3
      %p680 = scmp.ne.s32.totalorder %s675, %s677
      %p681 = scmp.eq.s32.totalorder %s79, 0
      %p682 = por %p680, %p681
      %p683 = scmp.ne.s32.totalorder %s675, %s677
      %p684 = scmp.eq.s32.totalorder %s84, 3
      %p685 = por %p683, %p684
      %p686 = scmp.ne.s32.totalorder %s677, %s678
      %p687 = scmp.eq.s32.totalorder %s84, 0
      %p688 = por %p686, %p687
      %p689 = scmp.ne.s32.totalorder %s677, %s678
      %p690 = scmp.eq.s32.totalorder %s85, 3
      %p691 = por %p689, %p690
      %p693 = scmp.ne.s32.totalorder %s678, %s692
      %p694 = scmp.eq.s32.totalorder %s85, 0
      %p695 = por %p693, %p694
      %s697 = sadd.s32 %s696, 1
      %p700 = scmp.eq.s32.totalorder %s79, 3
      %p701 = scmp.ne.s32.totalorder %s696, %s698
      %p702 = scmp.eq.s32.totalorder %s79, 0
      %p703 = por %p701, %p702
      %p704 = scmp.ne.s32.totalorder %s696, %s698
      %p705 = scmp.eq.s32.totalorder %s84, 3
      %p706 = por %p704, %p705
      %p707 = scmp.ne.s32.totalorder %s698, %s699
      %p708 = scmp.eq.s32.totalorder %s84, 0
      %p709 = por %p707, %p708
      %p710 = scmp.ne.s32.totalorder %s698, %s699
      %p711 = scmp.eq.s32.totalorder %s85, 3
      %p712 = por %p710, %p711
      %p714 = scmp.ne.s32.totalorder %s699, %s713
      %p715 = scmp.eq.s32.totalorder %s85, 0
      %p716 = por %p714, %p715
      %s718 = sadd.s32 %s717, 1
      %p721 = scmp.eq.s32.totalorder %s79, 3
      %p722 = scmp.ne.s32.totalorder %s717, %s719
      %p723 = scmp.eq.s32.totalorder %s79, 0
      %p724 = por %p722, %p723
      %p725 = scmp.ne.s32.totalorder %s717, %s719
      %p726 = scmp.eq.s32.totalorder %s84, 3
      %p727 = por %p725, %p726
      %p728 = scmp.ne.s32.totalorder %s719, %s720
      %p729 = scmp.eq.s32.totalorder %s84, 0
      %p730 = por %p728, %p729
      %p731 = scmp.ne.s32.totalorder %s719, %s720
      %p732 = scmp.eq.s32.totalorder %s85, 3
      %p733 = por %p731, %p732
      %p735 = scmp.ne.s32.totalorder %s720, %s734
      %p736 = scmp.eq.s32.totalorder %s85, 0
      %p737 = por %p735, %p736
      %s738 = ssub.s32 %s86, %s98
      %p739 = scmp.eq.s32.totalorder %s738, 0
      %s741 = sadd.s32 %s740, 1
      %s742 = scalar_select %p739, %s740, %s741
      %p745 = pneg %p739
      %p746 = scmp.eq.s32.totalorder %s79, 3
      %p747 = por %p745, %p746
      %p748 = scmp.ne.s32.totalorder %s740, %s743
      %p749 = scmp.eq.s32.totalorder %s79, 0
      %p750 = por %p748, %p749
      %p751 = scmp.ne.s32.totalorder %s740, %s743
      %p752 = scmp.eq.s32.totalorder %s84, 3
      %p753 = por %p751, %p752
      %p754 = scmp.ne.s32.totalorder %s743, %s744
      %p755 = scmp.eq.s32.totalorder %s84, 0
      %p756 = por %p754, %p755
      %p757 = scmp.ne.s32.totalorder %s743, %s744
      %p758 = scmp.eq.s32.totalorder %s85, 3
      %p759 = por %p757, %p758
      %p761 = scmp.ne.s32.totalorder %s744, %s760
      %p762 = scmp.eq.s32.totalorder %s85, 0
      %p763 = por %p761, %p762
      %s764 = ssub.s32 %s86, %s98
      %p765 = scmp.eq.s32.totalorder %s764, 0
      %s767 = sadd.s32 %s766, 1
      %s768 = scalar_select %p765, %s766, %s767
      %p771 = pneg %p765
      %p772 = scmp.eq.s32.totalorder %s79, 3
      %p773 = por %p771, %p772
      %p774 = scmp.ne.s32.totalorder %s766, %s769
      %p775 = scmp.eq.s32.totalorder %s79, 0
      %p776 = por %p774, %p775
      %p777 = scmp.ne.s32.totalorder %s766, %s769
      %p778 = scmp.eq.s32.totalorder %s84, 3
      %p779 = por %p777, %p778
      %p780 = scmp.ne.s32.totalorder %s769, %s770
      %p781 = scmp.eq.s32.totalorder %s84, 0
      %p782 = por %p780, %p781
      %p783 = scmp.ne.s32.totalorder %s769, %s770
      %p784 = scmp.eq.s32.totalorder %s85, 3
      %p785 = por %p783, %p784
      %p787 = scmp.ne.s32.totalorder %s770, %s786
      %p788 = scmp.eq.s32.totalorder %s85, 0
      %p789 = por %p787, %p788
      %p790 = scmp.le.s32.totalorder 1, %s79
      %p791 = scmp.lt.s32.totalorder %s79, 5
      %p792 = pnand %p790, %p791
      %p793 = pneg %p792
      // Predicated region
      $region9: #{tpu_custom_call.1} parent=5 // pred_check
        _
      $region10: #{tpu_custom_call.1} parent=5 // pred_check_branch
        %795 = sbr.rel (%p792) target = $region12
      $region11: #{tpu_custom_call.1} parent=5 // pred_region
        %s796 = ssub.s32 %s79, 1
        // Predicated region
        $region13: #{tpu_custom_call.1} parent=11 // pred_check
          %p797 = pneg %p117
        $region14: #{tpu_custom_call.1} parent=11 // pred_check_branch
          %799 = sbr.rel (%p797) target = $region16
        $region15: #{tpu_custom_call.1} parent=11 // pred_region
          %s800 = smul.u32 2, %s88
          %802 = vsyncadd [#allocation11], 0
          %s803 = smul.addr %s800, 8
          %s804 = scalar_lea.hbm %s1, %s803
          %s805 = sshll.u32 %s804, 4
          %s806 = int_to_ptr.hbm [resolvable:$true] %s805
          %s807 = sshll.u32 [#allocation10], 4
          %s808 = int_to_ptr.vmem [resolvable:$true] %s807
          %813 = dma.hbm_to_vmem [thread:$0]  %s806, 256, %s808, [#allocation11], 128, 128, 8
        $region16: #{tpu_custom_call.1} parent=11 // pred_fallthru
          _
        // Predicated region
        $region17: #{tpu_custom_call.1} parent=11 // pred_check
          %p814 = pneg %p143
        $region18: #{tpu_custom_call.1} parent=11 // pred_check_branch
          %816 = sbr.rel (%p814) target = $region20
        $region19: #{tpu_custom_call.1} parent=11 // pred_region
          %818 = vsyncadd [#allocation14], 0
          %s819 = smul.addr %s88, 2
          %s820 = scalar_lea.hbm %s3, %s819
          %s822 = sshll.u32 %s820, 4
          %s823 = int_to_ptr.hbm [resolvable:$true] %s822
          %s824 = sshll.u32 [#allocation13], 4
          %s825 = int_to_ptr.vmem [resolvable:$true] %s824
          %827 = dma.hbm_to_vmem [thread:$0]  %s823, 32, %s825, [#allocation14]
        $region20: #{tpu_custom_call.1} parent=11 // pred_fallthru
          _
        // Predicated region
        $region21: #{tpu_custom_call.1} parent=11 // pred_check
          %p828 = pneg %p169
        $region22: #{tpu_custom_call.1} parent=11 // pred_check_branch
          %830 = sbr.rel (%p828) target = $region24
        $region23: #{tpu_custom_call.1} parent=11 // pred_region
          %s831 = smul.u32 2, %s88
          %p832 = scmp.lt.s32.totalorder %s831, 1
          %s833 = scalar_select %p832, %s831, 1
          %s834 = smul.addr %s833, 4
          %s835 = smul.addr %s834, 8
          %s836 = scalar_lea.vmem %s5, %s835
          %s837 = smul.u32 2, %s88
        $region24: #{tpu_custom_call.1} parent=11 // pred_fallthru
          _
        // Predicated region
        $region25: #{tpu_custom_call.1} parent=11 // pred_check
          %p838 = pneg %p195
        $region26: #{tpu_custom_call.1} parent=11 // pred_check_branch
          %840 = sbr.rel (%p838) target = $region28
        $region27: #{tpu_custom_call.1} parent=11 // pred_region
          %842 = vsyncadd [#allocation14], 0
          %s843 = smul.addr %s88, 2
          %s844 = scalar_lea.hbm %s7, %s843
          %s846 = sshll.u32 %s844, 4
          %s847 = int_to_ptr.hbm [resolvable:$true] %s846
          %s848 = sshll.u32 [#allocation15], 4
          %s849 = int_to_ptr.vmem [resolvable:$true] %s848
          %851 = dma.hbm_to_vmem [thread:$0]  %s847, 32, %s849, [#allocation14]
        $region28: #{tpu_custom_call.1} parent=11 // pred_fallthru
          _
        // Predicated region
        $region29: #{tpu_custom_call.1} parent=11 // pred_check
          %p852 = pneg %p221
        $region30: #{tpu_custom_call.1} parent=11 // pred_check_branch
          %854 = sbr.rel (%p852) target = $region32
        $region31: #{tpu_custom_call.1} parent=11 // pred_region
          %p855 = scmp.lt.s32.totalorder %s88, 0
          %s856 = scalar_select %p855, %s88, 0
          %s857 = smul.addr %s856, 2
          %s858 = scalar_lea.vmem %s9, %s857
        $region32: #{tpu_custom_call.1} parent=11 // pred_fallthru
          _
        // Predicated region
        $region33: #{tpu_custom_call.1} parent=11 // pred_check
          %p859 = pneg %p247
        $region34: #{tpu_custom_call.1} parent=11 // pred_check_branch
          %861 = sbr.rel (%p859) target = $region36
        $region35: #{tpu_custom_call.1} parent=11 // pred_region
          %863 = vsyncadd [#allocation17], 0
          %s864 = smul.addr %s88, 2
          %s865 = scalar_lea.hbm %s11, %s864
          %s867 = sshll.u32 %s865, 4
          %s868 = int_to_ptr.hbm [resolvable:$true] %s867
          %s869 = sshll.u32 [#allocation16], 4
          %s870 = int_to_ptr.vmem [resolvable:$true] %s869
          %872 = dma.hbm_to_vmem [thread:$0]  %s868, 32, %s870, [#allocation17]
        $region36: #{tpu_custom_call.1} parent=11 // pred_fallthru
          _
        // Predicated region
        $region37: #{tpu_custom_call.1} parent=11 // pred_check
          %p873 = pneg %p268
        $region38: #{tpu_custom_call.1} parent=11 // pred_check_branch
          %875 = sbr.rel (%p873) target = $region40
        $region39: #{tpu_custom_call.1} parent=11 // pred_region
          _
        $region40: #{tpu_custom_call.1} parent=11 // pred_fallthru
          _
        // Predicated region
        $region41: #{tpu_custom_call.1} parent=11 // pred_check
          %p876 = pneg %p289
        $region42: #{tpu_custom_call.1} parent=11 // pred_check_branch
          %878 = sbr.rel (%p876) target = $region44
        $region43: #{tpu_custom_call.1} parent=11 // pred_region
          _
        $region44: #{tpu_custom_call.1} parent=11 // pred_fallthru
          _
        // Predicated region
        $region45: #{tpu_custom_call.1} parent=11 // pred_check
          %p879 = pneg %p310
        $region46: #{tpu_custom_call.1} parent=11 // pred_check_branch
          %881 = sbr.rel (%p879) target = $region48
        $region47: #{tpu_custom_call.1} parent=11 // pred_region
          %883 = vsyncadd [#allocation17], 0
          %s884 = sshll.u32 %s17, 4
          %s885 = int_to_ptr.hbm [resolvable:$true] %s884
          %s886 = sshll.u32 [#allocation18], 4
          %s887 = int_to_ptr.vmem [resolvable:$true] %s886
          %892 = dma.hbm_to_vmem [thread:$0]  %s885, 2048, %s887, [#allocation17], 128, 128, 8
        $region48: #{tpu_custom_call.1} parent=11 // pred_fallthru
          _
        // Predicated region
        $region49: #{tpu_custom_call.1} parent=11 // pred_check
          %p893 = pneg %p331
        $region50: #{tpu_custom_call.1} parent=11 // pred_check_branch
          %895 = sbr.rel (%p893) target = $region52
        $region51: #{tpu_custom_call.1} parent=11 // pred_region
          _
        $region52: #{tpu_custom_call.1} parent=11 // pred_fallthru
          _
        // Predicated region
        $region53: #{tpu_custom_call.1} parent=11 // pred_check
          %p896 = pneg %p352
        $region54: #{tpu_custom_call.1} parent=11 // pred_check_branch
          %898 = sbr.rel (%p896) target = $region56
        $region55: #{tpu_custom_call.1} parent=11 // pred_region
          _
        $region56: #{tpu_custom_call.1} parent=11 // pred_fallthru
          _
        // Predicated region
        $region57: #{tpu_custom_call.1} parent=11 // pred_check
          %p899 = pneg %p373
        $region58: #{tpu_custom_call.1} parent=11 // pred_check_branch
          %901 = sbr.rel (%p899) target = $region60
        $region59: #{tpu_custom_call.1} parent=11 // pred_region
          _
        $region60: #{tpu_custom_call.1} parent=11 // pred_fallthru
          _
        // Predicated region
        $region61: #{tpu_custom_call.1} parent=11 // pred_check
          %p902 = pneg %p394
        $region62: #{tpu_custom_call.1} parent=11 // pred_check_branch
          %904 = sbr.rel (%p902) target = $region64
        $region63: #{tpu_custom_call.1} parent=11 // pred_region
          _
        $region64: #{tpu_custom_call.1} parent=11 // pred_fallthru
          _
        // Predicated region
        $region65: #{tpu_custom_call.1} parent=11 // pred_check
          %p905 = pneg %p415
        $region66: #{tpu_custom_call.1} parent=11 // pred_check_branch
          %907 = sbr.rel (%p905) target = $region68
        $region67: #{tpu_custom_call.1} parent=11 // pred_region
          _
        $region68: #{tpu_custom_call.1} parent=11 // pred_fallthru
          _
        // Predicated region
        $region69: #{tpu_custom_call.1} parent=11 // pred_check
          %p908 = pneg %p436
        $region70: #{tpu_custom_call.1} parent=11 // pred_check_branch
          %910 = sbr.rel (%p908) target = $region72
        $region71: #{tpu_custom_call.1} parent=11 // pred_region
          _
        $region72: #{tpu_custom_call.1} parent=11 // pred_fallthru
          _
        // Predicated region
        $region73: #{tpu_custom_call.1} parent=11 // pred_check
          %p911 = pneg %p457
        $region74: #{tpu_custom_call.1} parent=11 // pred_check_branch
          %913 = sbr.rel (%p911) target = $region76
        $region75: #{tpu_custom_call.1} parent=11 // pred_region
          %915 = vsyncadd [#allocation20], 0
          %s916 = sshll.u32 %s31, 4
          %s917 = int_to_ptr.hbm [resolvable:$true] %s916
          %s918 = sshll.u32 [#allocation19], 4
          %s919 = int_to_ptr.vmem [resolvable:$true] %s918
          %924 = dma.hbm_to_vmem [thread:$0]  %s917, 512, %s919, [#allocation20], 128, 128, 8
        $region76: #{tpu_custom_call.1} parent=11 // pred_fallthru
          _
        // Predicated region
        $region77: #{tpu_custom_call.1} parent=11 // pred_check
          %p925 = pneg %p478
        $region78: #{tpu_custom_call.1} parent=11 // pred_check_branch
          %927 = sbr.rel (%p925) target = $region80
        $region79: #{tpu_custom_call.1} parent=11 // pred_region
          _
        $region80: #{tpu_custom_call.1} parent=11 // pred_fallthru
          _
        // Predicated region
        $region81: #{tpu_custom_call.1} parent=11 // pred_check
          %p928 = pneg %p499
        $region82: #{tpu_custom_call.1} parent=11 // pred_check_branch
          %930 = sbr.rel (%p928) target = $region84
        $region83: #{tpu_custom_call.1} parent=11 // pred_region
          %932 = vsyncadd [#allocation20], 0
          %s933 = sshll.u32 %s35, 4
          %s934 = int_to_ptr.hbm [resolvable:$true] %s933
          %s935 = sshll.u32 [#allocation21], 4
          %s936 = int_to_ptr.vmem [resolvable:$true] %s935
          %941 = dma.hbm_to_vmem [thread:$0]  %s934, 512, %s936, [#allocation20], 128, 128, 8
        $region84: #{tpu_custom_call.1} parent=11 // pred_fallthru
          _
        // Predicated region
        $region85: #{tpu_custom_call.1} parent=11 // pred_check
          %p942 = pneg %p520
        $region86: #{tpu_custom_call.1} parent=11 // pred_check_branch
          %944 = sbr.rel (%p942) target = $region88
        $region87: #{tpu_custom_call.1} parent=11 // pred_region
          _
        $region88: #{tpu_custom_call.1} parent=11 // pred_fallthru
          _
        // Predicated region
        $region89: #{tpu_custom_call.1} parent=11 // pred_check
          %p945 = pneg %p541
        $region90: #{tpu_custom_call.1} parent=11 // pred_check_branch
          %947 = sbr.rel (%p945) target = $region92
        $region91: #{tpu_custom_call.1} parent=11 // pred_region
          %949 = vsyncadd [#allocation23], 0
          %s950 = sshll.u32 %s39, 4
          %s951 = int_to_ptr.hbm [resolvable:$true] %s950
          %s952 = sshll.u32 [#allocation22], 4
          %s953 = int_to_ptr.vmem [resolvable:$true] %s952
          %958 = dma.hbm_to_vmem [thread:$0]  %s951, 512, %s953, [#allocation23], 128, 128, 8
        $region92: #{tpu_custom_call.1} parent=11 // pred_fallthru
          _
        // Predicated region
        $region93: #{tpu_custom_call.1} parent=11 // pred_check
          %p959 = pneg %p562
        $region94: #{tpu_custom_call.1} parent=11 // pred_check_branch
          %961 = sbr.rel (%p959) target = $region96
        $region95: #{tpu_custom_call.1} parent=11 // pred_region
          %963 = vsyncadd [#allocation23], 0
          %s964 = sshll.u32 %s41, 4
          %s965 = int_to_ptr.hbm [resolvable:$true] %s964
          %s966 = sshll.u32 [#allocation24], 4
          %s967 = int_to_ptr.vmem [resolvable:$true] %s966
          %972 = dma.hbm_to_vmem [thread:$0]  %s965, 512, %s967, [#allocation23], 128, 128, 8
        $region96: #{tpu_custom_call.1} parent=11 // pred_fallthru
          _
        // Predicated region
        $region97: #{tpu_custom_call.1} parent=11 // pred_check
          %p973 = pneg %p583
        $region98: #{tpu_custom_call.1} parent=11 // pred_check_branch
          %975 = sbr.rel (%p973) target = $region100
        $region99: #{tpu_custom_call.1} parent=11 // pred_region
          _
        $region100: #{tpu_custom_call.1} parent=11 // pred_fallthru
          _
        // Predicated region
        $region101: #{tpu_custom_call.1} parent=11 // pred_check
          %p976 = pneg %p604
        $region102: #{tpu_custom_call.1} parent=11 // pred_check_branch
          %978 = sbr.rel (%p976) target = $region104
        $region103: #{tpu_custom_call.1} parent=11 // pred_region
          %980 = vsyncadd [#allocation26], 0
          %s981 = sshll.u32 %s45, 4
          %s982 = int_to_ptr.hbm [resolvable:$true] %s981
          %s983 = sshll.u32 [#allocation25], 4
          %s984 = int_to_ptr.vmem [resolvable:$true] %s983
          %989 = dma.hbm_to_vmem [thread:$0]  %s982, 512, %s984, [#allocation26], 128, 128, 8
        $region104: #{tpu_custom_call.1} parent=11 // pred_fallthru
          _
        // Predicated region
        $region105: #{tpu_custom_call.1} parent=11 // pred_check
          %p990 = pneg %p625
        $region106: #{tpu_custom_call.1} parent=11 // pred_check_branch
          %992 = sbr.rel (%p990) target = $region108
        $region107: #{tpu_custom_call.1} parent=11 // pred_region
          _
        $region108: #{tpu_custom_call.1} parent=11 // pred_fallthru
          _
        // Predicated region
        $region109: #{tpu_custom_call.1} parent=11 // pred_check
          %p993 = pneg %p646
        $region110: #{tpu_custom_call.1} parent=11 // pred_check_branch
          %995 = sbr.rel (%p993) target = $region112
        $region111: #{tpu_custom_call.1} parent=11 // pred_region
          _
        $region112: #{tpu_custom_call.1} parent=11 // pred_fallthru
          _
        // Predicated region
        $region113: #{tpu_custom_call.1} parent=11 // pred_check
          %p996 = pneg %p667
        $region114: #{tpu_custom_call.1} parent=11 // pred_check_branch
          %998 = sbr.rel (%p996) target = $region116
        $region115: #{tpu_custom_call.1} parent=11 // pred_region
          _
        $region116: #{tpu_custom_call.1} parent=11 // pred_fallthru
          _
        // Predicated region
        $region117: #{tpu_custom_call.1} parent=11 // pred_check
          %p999 = pneg %p688
        $region118: #{tpu_custom_call.1} parent=11 // pred_check_branch
          %1001 = sbr.rel (%p999) target = $region120
        $region119: #{tpu_custom_call.1} parent=11 // pred_region
          %1003 = vsyncadd [#allocation26], 0
          %s1004 = sshll.u32 %s53, 4
          %s1005 = int_to_ptr.hbm [resolvable:$true] %s1004
          %s1006 = sshll.u32 [#allocation27], 4
          %s1007 = int_to_ptr.vmem [resolvable:$true] %s1006
          %1012 = dma.hbm_to_vmem [thread:$0]  %s1005, 512, %s1007, [#allocation26], 128, 128, 8
        $region120: #{tpu_custom_call.1} parent=11 // pred_fallthru
          _
        // Predicated region
        $region121: #{tpu_custom_call.1} parent=11 // pred_check
          %p1013 = pneg %p709
        $region122: #{tpu_custom_call.1} parent=11 // pred_check_branch
          %1015 = sbr.rel (%p1013) target = $region124
        $region123: #{tpu_custom_call.1} parent=11 // pred_region
          %1017 = vsyncadd [#allocation29], 0
          %s1018 = sshll.u32 %s55, 4
          %s1019 = int_to_ptr.hbm [resolvable:$true] %s1018
          %s1020 = sshll.u32 [#allocation28], 4
          %s1021 = int_to_ptr.vmem [resolvable:$true] %s1020
          %1026 = dma.hbm_to_vmem [thread:$0]  %s1019, 512, %s1021, [#allocation29], 128, 128, 8
        $region124: #{tpu_custom_call.1} parent=11 // pred_fallthru
          _
        // Predicated region
        $region125: #{tpu_custom_call.1} parent=11 // pred_check
          %p1027 = pneg %p730
        $region126: #{tpu_custom_call.1} parent=11 // pred_check_branch
          %1029 = sbr.rel (%p1027) target = $region128
        $region127: #{tpu_custom_call.1} parent=11 // pred_region
          _
        $region128: #{tpu_custom_call.1} parent=11 // pred_fallthru
          _
      $region12: #{tpu_custom_call.1} parent=5 // pred_fallthru
        _
      %p1030 = scmp.lt.s32.totalorder %s79, 4
      // Predicated region
      $region129: #{tpu_custom_call.1} parent=5 // pred_check
        %p1031 = pneg %p1030
      $region130: #{tpu_custom_call.1} parent=5 // pred_check_branch
        %1033 = sbr.rel (%p1031) target = $region132
      $region131: #{tpu_custom_call.1} parent=5 // pred_region
        _
      $region132: #{tpu_custom_call.1} parent=5 // pred_fallthru
        _
      %p1034 = scmp.le.s32.totalorder 1, %s79
      %p1035 = scmp.lt.s32.totalorder %s79, 5
      %p1036 = pnand %p1034, %p1035
      %p1037 = pneg %p1036
      // Predicated region
      $region133: #{tpu_custom_call.1} parent=5 // pred_check
        _
      $region134: #{tpu_custom_call.1} parent=5 // pred_check_branch
        %1039 = sbr.rel (%p1036) target = $region136
      $region135: #{tpu_custom_call.1} parent=5 // pred_region
        %s1040 = ssub.s32 %s79, 1
        // Predicated region
        $region137: #{tpu_custom_call.1} parent=135 // pred_check
          %p1041 = pneg %p117
        $region138: #{tpu_custom_call.1} parent=135 // pred_check_branch
          %1043 = sbr.rel (%p1041) target = $region140
        $region139: #{tpu_custom_call.1} parent=135 // pred_region
          %1045 = dma.done [#allocation11], 256
        $region140: #{tpu_custom_call.1} parent=135 // pred_fallthru
          _
        // Predicated region
        $region141: #{tpu_custom_call.1} parent=135 // pred_check
          %p1046 = pneg %p143
        $region142: #{tpu_custom_call.1} parent=135 // pred_check_branch
          %1048 = sbr.rel (%p1046) target = $region144
        $region143: #{tpu_custom_call.1} parent=135 // pred_region
          %1050 = dma.done [#allocation14], 32
        $region144: #{tpu_custom_call.1} parent=135 // pred_fallthru
          _
        // Predicated region
        $region145: #{tpu_custom_call.1} parent=135 // pred_check
          %p1051 = pneg %p195
        $region146: #{tpu_custom_call.1} parent=135 // pred_check_branch
          %1053 = sbr.rel (%p1051) target = $region148
        $region147: #{tpu_custom_call.1} parent=135 // pred_region
          %1055 = dma.done [#allocation14], 32
        $region148: #{tpu_custom_call.1} parent=135 // pred_fallthru
          _
        // Predicated region
        $region149: #{tpu_custom_call.1} parent=135 // pred_check
          %p1056 = pneg %p247
        $region150: #{tpu_custom_call.1} parent=135 // pred_check_branch
          %1058 = sbr.rel (%p1056) target = $region152
        $region151: #{tpu_custom_call.1} parent=135 // pred_region
          %1060 = dma.done [#allocation17], 32
        $region152: #{tpu_custom_call.1} parent=135 // pred_fallthru
          _
        // Predicated region
        $region153: #{tpu_custom_call.1} parent=135 // pred_check
          %p1061 = pneg %p310
        $region154: #{tpu_custom_call.1} parent=135 // pred_check_branch
          %1063 = sbr.rel (%p1061) target = $region156
        $region155: #{tpu_custom_call.1} parent=135 // pred_region
          %1065 = dma.done [#allocation17], 2048
        $region156: #{tpu_custom_call.1} parent=135 // pred_fallthru
          _
        // Predicated region
        $region157: #{tpu_custom_call.1} parent=135 // pred_check
          %p1066 = pneg %p457
        $region158: #{tpu_custom_call.1} parent=135 // pred_check_branch
          %1068 = sbr.rel (%p1066) target = $region160
        $region159: #{tpu_custom_call.1} parent=135 // pred_region
          %1070 = dma.done [#allocation20], 512
        $region160: #{tpu_custom_call.1} parent=135 // pred_fallthru
          _
        // Predicated region
        $region161: #{tpu_custom_call.1} parent=135 // pred_check
          %p1071 = pneg %p499
        $region162: #{tpu_custom_call.1} parent=135 // pred_check_branch
          %1073 = sbr.rel (%p1071) target = $region164
        $region163: #{tpu_custom_call.1} parent=135 // pred_region
          %1075 = dma.done [#allocation20], 512
        $region164: #{tpu_custom_call.1} parent=135 // pred_fallthru
          _
        // Predicated region
        $region165: #{tpu_custom_call.1} parent=135 // pred_check
          %p1076 = pneg %p541
        $region166: #{tpu_custom_call.1} parent=135 // pred_check_branch
          %1078 = sbr.rel (%p1076) target = $region168
        $region167: #{tpu_custom_call.1} parent=135 // pred_region
          %1080 = dma.done [#allocation23], 512
        $region168: #{tpu_custom_call.1} parent=135 // pred_fallthru
          _
        // Predicated region
        $region169: #{tpu_custom_call.1} parent=135 // pred_check
          %p1081 = pneg %p562
        $region170: #{tpu_custom_call.1} parent=135 // pred_check_branch
          %1083 = sbr.rel (%p1081) target = $region172
        $region171: #{tpu_custom_call.1} parent=135 // pred_region
          %1085 = dma.done [#allocation23], 512
        $region172: #{tpu_custom_call.1} parent=135 // pred_fallthru
          _
        // Predicated region
        $region173: #{tpu_custom_call.1} parent=135 // pred_check
          %p1086 = pneg %p604
        $region174: #{tpu_custom_call.1} parent=135 // pred_check_branch
          %1088 = sbr.rel (%p1086) target = $region176
        $region175: #{tpu_custom_call.1} parent=135 // pred_region
          %1090 = dma.done [#allocation26], 512
        $region176: #{tpu_custom_call.1} parent=135 // pred_fallthru
          _
        // Predicated region
        $region177: #{tpu_custom_call.1} parent=135 // pred_check
          %p1091 = pneg %p688
        $region178: #{tpu_custom_call.1} parent=135 // pred_check_branch
          %1093 = sbr.rel (%p1091) target = $region180
        $region179: #{tpu_custom_call.1} parent=135 // pred_region
          %1095 = dma.done [#allocation26], 512
        $region180: #{tpu_custom_call.1} parent=135 // pred_fallthru
          _
        // Predicated region
        $region181: #{tpu_custom_call.1} parent=135 // pred_check
          %p1096 = pneg %p709
        $region182: #{tpu_custom_call.1} parent=135 // pred_check_branch
          %1098 = sbr.rel (%p1096) target = $region184
        $region183: #{tpu_custom_call.1} parent=135 // pred_region
          %1100 = dma.done [#allocation29], 512
        $region184: #{tpu_custom_call.1} parent=135 // pred_fallthru
          _
        %p1101 = pneg %p117
        %p1102 = pneg %p114
        %p1103 = pneg %p143
        %p1104 = pneg %p140
        %s1105 = smul.u32 2, %s88
        %p1106 = scmp.lt.s32.totalorder %s1105, 1
        %s1107 = scalar_select %p1106, %s1105, 1
        %s1108 = smul.addr %s1107, 4
        %s1109 = smul.addr %s1108, 8
        %s1110 = scalar_lea.vmem %s5, %s1109
        %p1111 = pneg %p169
        %p1112 = pneg %p166
        %p1113 = pneg %p195
        %p1114 = pneg %p192
        %p1115 = scmp.lt.s32.totalorder %s88, 0
        %s1116 = scalar_select %p1115, %s88, 0
        %s1117 = smul.addr %s1116, 2
        %s1118 = scalar_lea.vmem %s9, %s1117
        %p1119 = pneg %p221
        %p1120 = pneg %p218
        %p1121 = pneg %p247
        %p1122 = pneg %p244
        %p1123 = pneg %p268
        %p1124 = pneg %p265
        %p1125 = pneg %p289
        %p1126 = pneg %p286
        %p1127 = pneg %p310
        %p1128 = pneg %p307
        %p1129 = pneg %p331
        %p1130 = pneg %p328
        %p1131 = pneg %p352
        %p1132 = pneg %p349
        %p1133 = pneg %p373
        %p1134 = pneg %p370
        %p1135 = pneg %p394
        %p1136 = pneg %p391
        %p1137 = pneg %p415
        %p1138 = pneg %p412
        %p1139 = pneg %p436
        %p1140 = pneg %p433
        %p1141 = pneg %p457
        %p1142 = pneg %p454
        %p1143 = pneg %p478
        %p1144 = pneg %p475
        %p1145 = pneg %p499
        %p1146 = pneg %p496
        %p1147 = pneg %p520
        %p1148 = pneg %p517
        %p1149 = pneg %p541
        %p1150 = pneg %p538
        %p1151 = pneg %p562
        %p1152 = pneg %p559
        %p1153 = pneg %p583
        %p1154 = pneg %p580
        %p1155 = pneg %p604
        %p1156 = pneg %p601
        %p1157 = pneg %p625
        %p1158 = pneg %p622
        %p1159 = pneg %p646
        %p1160 = pneg %p643
        %p1161 = pneg %p667
        %p1162 = pneg %p664
        %p1163 = pneg %p688
        %p1164 = pneg %p685
        %p1165 = pneg %p709
        %p1166 = pneg %p706
        %p1167 = pneg %p730
        %p1168 = pneg %p727
        %p1169 = pneg %p756
        %p1170 = pneg %p753
        %p1171 = pneg %p782
        %p1172 = pneg %p779
        %s1173 = smul.u32 2, %s88
        %s1174 = smul.u32 2, %s88
        %p1175 = scmp.lt.s32.totalorder %s1174, 1
        %s1176 = scalar_select %p1175, %s1174, 1
        %s1177 = smul.addr %s1176, 4
        %s1178 = smul.addr %s1177, 8
        %s1179 = scalar_lea.vmem %s5, %s1178
        %s1180 = smul.u32 2, %s88
        %p1181 = scmp.lt.s32.totalorder %s88, 0
        %s1182 = scalar_select %p1181, %s88, 0
        %s1183 = smul.addr %s1182, 2
        %s1184 = scalar_lea.vmem %s9, %s1183
        %p1185 = scmp.eq.s32.totalorder %s89, 0
        // Predicated region
        $region185: #{tpu_custom_call.1} parent=135 // pred_check
          %p1186 = pneg %p1185
        $region186: #{tpu_custom_call.1} parent=135 // pred_check_branch
          %1188 = sbr.rel (%p1186) target = $region188
        $region187: #{tpu_custom_call.1} parent=135 // pred_region
          %v1189 = vld [vmem:[#allocation15] sm:$0x3]
          %vm1190 = vcmask 254976
          %1191 = vst.msk [vmem:[#allocation2] sm:$0x3] %vm1190, %v1189
          %v1192 = vld [vmem:[%s1184] sm:$0x3]
          %1193 = vst.msk [vmem:[#allocation3] sm:$0x3] %vm1190, %v1192
          %v1194 = vld [vmem:[#allocation13] sm:$0x3]
          %v1195 = vld [vmem:[%s13] sm:$0xff]
          %v1196 = vld [vmem:[%s13 + $0x8] sm:$0xff]
          %v1197 = vld [vmem:[%s13 + $0x10] sm:$0xff]
          %v1198 = vld [vmem:[%s13 + $0x18] sm:$0xff]
          %v1199 = vld [vmem:[%s15] sm:$0x1]
          %v1201 = vperm.slane %v1199, 0
          %vm1203 = vcmask 261120
          %v1205 = vsel %vm1203, %v1194, 0
          %1207 = vmatpush.msra.mxu0 0.0
          %1208 = vmatpush.msra.mxu0 0.0
          %1209 = vmatpush.msra.mxu0 0.0
          %1210 = vmatpush.msra.mxu0 0.0
          %1211 = vmatpush.msra.mxu0 0.0
          %1212 = vmatpush.msra.mxu0 0.0
          %1213 = vmatpush.msra.mxu0 0.0
          %1214 = vmatpush.msra.mxu0 0.0
          %1215 = vmatpush.msra.mxu0 0.0
          %1216 = vmatpush.msra.mxu0 0.0
          %1217 = vmatpush.msra.mxu0 0.0
          %1218 = vmatpush.msra.mxu0 0.0
          %1219 = vmatpush.msra.mxu0 %v1198
          %1220 = vmatpush.msra.mxu0 %v1197
          %1221 = vmatpush.msra.mxu0 %v1196
          %1222 = vmatpush.msra.mxu0 %v1195
          %1223 = vmatmul.f32.gmra.mxu0 %v1205
          %v1224 = vpop.f32.mrf.mxu0
          %v1225 = vadd.f32 %v1201, %v1224
          %1226 = vdwg.mxu0
          %v1227 = vtanh.pop %v1225
          %1228 = vst.msk [vmem:[#allocation4] sm:$0x3] %vm1190, %v1227
          %v1229 = vld [vmem:[%s1179] sm:$0xff]
          %v1230 = vld [vmem:[%s1179 + $0x8] sm:$0xff]
          %v1231 = vld [vmem:[%s1179 + $0x10] sm:$0xff]
          %v1232 = vld [vmem:[%s1179 + $0x18] sm:$0xff]
          %1233 = vxpose.xlu0.b32.start [1/16] %v1229, 128
          %1234 = vxpose.xlu0.b32.cont [2/16] %v1230, 128
          %1235 = vxpose.xlu0.b32.cont [3/16] %v1231, 128
          %1236 = vxpose.xlu0.b32.cont [4/16] %v1232, 128
          %1237 = vxpose.xlu0.b32.cont [5/16] 0.0, 128
          %1238 = vxpose.xlu0.b32.cont [6/16] 0.0, 128
          %1239 = vxpose.xlu0.b32.cont [7/16] 0.0, 128
          %1240 = vxpose.xlu0.b32.cont [8/16] 0.0, 128
          %1241 = vxpose.xlu0.b32.cont [9/16] 0.0, 128
          %1242 = vxpose.xlu0.b32.cont [10/16] 0.0, 128
          %1243 = vxpose.xlu0.b32.cont [11/16] 0.0, 128
          %1244 = vxpose.xlu0.b32.cont [12/16] 0.0, 128
          %1245 = vxpose.xlu0.b32.cont [13/16] 0.0, 128
          %1246 = vxpose.xlu0.b32.cont [14/16] 0.0, 128
          %1247 = vxpose.xlu0.b32.cont [15/16] 0.0, 128
          %1248 = vxpose.xlu0.b32.end [16/16] 0.0, 128
          %v1249 = vpop.trf.xlu0
          %v1250 = vpop.trf.xlu0
          %v1251 = vpop.trf.xlu0
          %v1252 = vpop.trf.xlu0
          %v1253 = vpop.trf.xlu0
          %v1254 = vpop.trf.xlu0
          %v1255 = vpop.trf.xlu0
          %v1256 = vpop.trf.xlu0
          %v1257 = vpop.trf.xlu0
          %v1258 = vpop.trf.xlu0
          %v1259 = vpop.trf.xlu0
          %v1260 = vpop.trf.xlu0
          %v1261 = vpop.trf.xlu0
          %v1262 = vpop.trf.xlu0
          %v1263 = vpop.trf.xlu0
          %v1264 = vpop.trf.xlu0
          %1265 = vst.msk [vmem:[#allocation5] sm:$0xff] %vm1203, %v1249
          %1266 = vst.msk [vmem:[#allocation5 + $0x8] sm:$0xff] %vm1203, %v1250
          %s1267 = scalar_lea.vmem %s1179, 32
          %v1268 = vld [vmem:[%s1267] sm:$0xff]
          %v1269 = vld [vmem:[%s1267 + $0x8] sm:$0xff]
          %v1270 = vld [vmem:[%s1267 + $0x10] sm:$0xff]
          %v1271 = vld [vmem:[%s1267 + $0x18] sm:$0xff]
          %1272 = vxpose.xlu0.b32.start [1/16] %v1268, 128
          %1273 = vxpose.xlu0.b32.cont [2/16] %v1269, 128
          %1274 = vxpose.xlu0.b32.cont [3/16] %v1270, 128
          %1275 = vxpose.xlu0.b32.cont [4/16] %v1271, 128
          %1276 = vxpose.xlu0.b32.cont [5/16] 0.0, 128
          %1277 = vxpose.xlu0.b32.cont [6/16] 0.0, 128
          %1278 = vxpose.xlu0.b32.cont [7/16] 0.0, 128
          %1279 = vxpose.xlu0.b32.cont [8/16] 0.0, 128
          %1280 = vxpose.xlu0.b32.cont [9/16] 0.0, 128
          %1281 = vxpose.xlu0.b32.cont [10/16] 0.0, 128
          %1282 = vxpose.xlu0.b32.cont [11/16] 0.0, 128
          %1283 = vxpose.xlu0.b32.cont [12/16] 0.0, 128
          %1284 = vxpose.xlu0.b32.cont [13/16] 0.0, 128
          %1285 = vxpose.xlu0.b32.cont [14/16] 0.0, 128
          %1286 = vxpose.xlu0.b32.cont [15/16] 0.0, 128
          %1287 = vxpose.xlu0.b32.end [16/16] 0.0, 128
          %v1288 = vpop.trf.xlu0
          %v1289 = vpop.trf.xlu0
          %v1290 = vpop.trf.xlu0
          %v1291 = vpop.trf.xlu0
          %v1292 = vpop.trf.xlu0
          %v1293 = vpop.trf.xlu0
          %v1294 = vpop.trf.xlu0
          %v1295 = vpop.trf.xlu0
          %v1296 = vpop.trf.xlu0
          %v1297 = vpop.trf.xlu0
          %v1298 = vpop.trf.xlu0
          %v1299 = vpop.trf.xlu0
          %v1300 = vpop.trf.xlu0
          %v1301 = vpop.trf.xlu0
          %v1302 = vpop.trf.xlu0
          %v1303 = vpop.trf.xlu0
          %s1304 = scalar_lea.vmem [#allocation5], 16
          %1305 = vst.msk [vmem:[%s1304] sm:$0xff] %vm1203, %v1288
          %1306 = vst.msk [vmem:[%s1304 + $0x8] sm:$0xff] %vm1203, %v1289
          %v1307 = vld [vmem:[#allocation5] sm:$0xff]
          %v1308 = vld [vmem:[#allocation5 + $0x8] sm:$0xff]
          %v1309 = vld [vmem:[#allocation5 + $0x10] sm:$0xff]
          %v1310 = vld [vmem:[#allocation5 + $0x18] sm:$0xff]
          %v1311 = vld [vmem:[#allocation21] sm:$0xff]
          %v1312 = vld [vmem:[#allocation21 + $0x8] sm:$0xff]
          %v1313 = vld [vmem:[#allocation21 + $0x10] sm:$0xff]
          %v1314 = vld [vmem:[#allocation21 + $0x18] sm:$0xff]
          %v1315 = vld [vmem:[%s37] sm:$0x1]
          %v1317 = vperm.slane %v1315, 0
          %v1320 = vsel %vm1203, %v1307, 0
          %v1323 = vsel %vm1203, %v1308, 0
          %v1326 = vsel %vm1203, %v1309, 0
          %v1329 = vsel %vm1203, %v1310, 0
          %1331 = vmatpush.msra.mxu0 0.0
          %1332 = vmatpush.msra.mxu0 0.0
          %1333 = vmatpush.msra.mxu0 0.0
          %1334 = vmatpush.msra.mxu0 0.0
          %1335 = vmatpush.msra.mxu0 0.0
          %1336 = vmatpush.msra.mxu0 0.0
          %1337 = vmatpush.msra.mxu0 0.0
          %1338 = vmatpush.msra.mxu0 0.0
          %1339 = vmatpush.msra.mxu0 0.0
          %1340 = vmatpush.msra.mxu0 0.0
          %1341 = vmatpush.msra.mxu0 0.0
          %1342 = vmatpush.msra.mxu0 0.0
          %1343 = vmatpush.msra.mxu0 %v1314
          %1344 = vmatpush.msra.mxu0 %v1313
          %1345 = vmatpush.msra.mxu0 %v1312
          %1346 = vmatpush.msra.mxu0 %v1311
          %1347 = vmatmul.f32.gmra.mxu0 %v1320
          %v1348 = vpop.f32.mrf.mxu0
          %v1349 = vadd.f32 %v1317, %v1348
          %1350 = vmatmul.f32.gmra.mxu0 %v1323
          %v1351 = vpop.f32.mrf.mxu0
          %v1352 = vadd.f32 %v1317, %v1351
          %1353 = vmatmul.f32.gmra.mxu0 %v1326
          %v1354 = vpop.f32.mrf.mxu0
          %v1355 = vadd.f32 %v1317, %v1354
          %1356 = vmatmul.f32.gmra.mxu0 %v1329
          %v1357 = vpop.f32.mrf.mxu0
          %v1358 = vadd.f32 %v1317, %v1357
          %1359 = vdwg.mxu0
          %1360 = vst.msk [vmem:[#allocation6] sm:$0xff] %vm1203, %v1349
          %1361 = vst.msk [vmem:[#allocation6 + $0x8] sm:$0xff] %vm1203, %v1352
          %1362 = vst.msk [vmem:[#allocation6 + $0x10] sm:$0xff] %vm1203, %v1355
          %1363 = vst.msk [vmem:[#allocation6 + $0x18] sm:$0xff] %vm1203, %v1358
          %v1364 = vld [vmem:[#allocation24] sm:$0xff]
          %v1365 = vld [vmem:[#allocation24 + $0x8] sm:$0xff]
          %v1366 = vld [vmem:[#allocation24 + $0x10] sm:$0xff]
          %v1367 = vld [vmem:[#allocation24 + $0x18] sm:$0xff]
          %v1368 = vld [vmem:[%s43] sm:$0x1]
          %v1370 = vperm.slane %v1368, 0
          %v1373 = vsel %vm1203, %v1349, 0
          %v1376 = vsel %vm1203, %v1352, 0
          %v1379 = vsel %vm1203, %v1355, 0
          %v1382 = vsel %vm1203, %v1358, 0
          %1384 = vmatpush.msra.mxu0 0.0
          %1385 = vmatpush.msra.mxu0 0.0
          %1386 = vmatpush.msra.mxu0 0.0
          %1387 = vmatpush.msra.mxu0 0.0
          %1388 = vmatpush.msra.mxu0 0.0
          %1389 = vmatpush.msra.mxu0 0.0
          %1390 = vmatpush.msra.mxu0 0.0
          %1391 = vmatpush.msra.mxu0 0.0
          %1392 = vmatpush.msra.mxu0 0.0
          %1393 = vmatpush.msra.mxu0 0.0
          %1394 = vmatpush.msra.mxu0 0.0
          %1395 = vmatpush.msra.mxu0 0.0
          %1396 = vmatpush.msra.mxu0 %v1367
          %1397 = vmatpush.msra.mxu0 %v1366
          %1398 = vmatpush.msra.mxu0 %v1365
          %1399 = vmatpush.msra.mxu0 %v1364
          %1400 = vmatmul.f32.gmra.mxu0 %v1373
          %v1401 = vpop.f32.mrf.mxu0
          %v1402 = vadd.f32 %v1370, %v1401
          %1403 = vmatmul.f32.gmra.mxu0 %v1376
          %v1404 = vpop.f32.mrf.mxu0
          %v1405 = vadd.f32 %v1370, %v1404
          %1406 = vmatmul.f32.gmra.mxu0 %v1379
          %v1407 = vpop.f32.mrf.mxu0
          %v1408 = vadd.f32 %v1370, %v1407
          %1409 = vmatmul.f32.gmra.mxu0 %v1382
          %v1410 = vpop.f32.mrf.mxu0
          %v1411 = vadd.f32 %v1370, %v1410
          %1412 = vdwg.mxu0
          %1413 = vst.msk [vmem:[#allocation7] sm:$0xff] %vm1203, %v1402
          %1414 = vst.msk [vmem:[#allocation7 + $0x8] sm:$0xff] %vm1203, %v1405
          %1415 = vst.msk [vmem:[#allocation7 + $0x10] sm:$0xff] %vm1203, %v1408
          %1416 = vst.msk [vmem:[#allocation7 + $0x18] sm:$0xff] %vm1203, %v1411
        $region188: #{tpu_custom_call.1} parent=135 // pred_fallthru
          _
        %v1417 = vld [vmem:[#allocation2] sm:$0x3]
        %v1418 = vld [vmem:[#allocation3] sm:$0x3]
        %v1419 = vld [vmem:[#allocation10] sm:$0xff]
        %v1420 = vld [vmem:[#allocation10 + $0x8] sm:$0xff]
        %v1421 = vld [vmem:[#allocation4] sm:$0x3]
        %s1422 = smul.u32 %s89, 32
        %s1423 = scalar_lea.vmem [#allocation18], %s1422
        %v1424 = vld [vmem:[%s1423] sm:$0xff]
        %v1425 = vld [vmem:[%s1423 + $0x8] sm:$0xff]
        %v1426 = vld [vmem:[%s1423 + $0x10] sm:$0xff]
        %v1427 = vld [vmem:[%s1423 + $0x18] sm:$0xff]
        %s1428 = scalar_lea.vmem %s19, %s89
        %v1429 = vld [vmem:[%s1428] sm:$0x1]
        %v1431 = vperm.slane %v1429, 0
        %vm1433 = vcmask 261120
        %v1435 = vsel %vm1433, %v1421, 0
        %1437 = vmatpush.msra.mxu0 0.0
        %1438 = vmatpush.msra.mxu0 0.0
        %1439 = vmatpush.msra.mxu0 0.0
        %1440 = vmatpush.msra.mxu0 0.0
        %1441 = vmatpush.msra.mxu0 0.0
        %1442 = vmatpush.msra.mxu0 0.0
        %1443 = vmatpush.msra.mxu0 0.0
        %1444 = vmatpush.msra.mxu0 0.0
        %1445 = vmatpush.msra.mxu0 0.0
        %1446 = vmatpush.msra.mxu0 0.0
        %1447 = vmatpush.msra.mxu0 0.0
        %1448 = vmatpush.msra.mxu0 0.0
        %1449 = vmatpush.msra.mxu0 %v1427
        %1450 = vmatpush.msra.mxu0 %v1426
        %1451 = vmatpush.msra.mxu0 %v1425
        %1452 = vmatpush.msra.mxu0 %v1424
        %1453 = vmatmul.f32.gmra.mxu0 %v1435
        %v1454 = vpop.f32.mrf.mxu0
        %v1455 = vadd.f32 %v1431, %v1454
        %1456 = vdwg.mxu0
        %v1457 = vld [vmem:[%s21] sm:$0xff]
        %v1458 = vld [vmem:[%s21 + $0x8] sm:$0xff]
        %v1459 = vld [vmem:[%s21 + $0x10] sm:$0xff]
        %v1460 = vld [vmem:[%s21 + $0x18] sm:$0xff]
        %v1461 = vld [vmem:[%s23] sm:$0xff]
        %v1462 = vld [vmem:[%s23 + $0x8] sm:$0xff]
        %v1463 = vld [vmem:[%s23 + $0x10] sm:$0xff]
        %v1464 = vld [vmem:[%s23 + $0x18] sm:$0xff]
        %v1466 = vsel %vm1433, %v1455, 0
        %1468 = vmatpush.msra.mxu0 0.0
        %1469 = vmatpush.msra.mxu0 0.0
        %1470 = vmatpush.msra.mxu0 0.0
        %1471 = vmatpush.msra.mxu0 0.0
        %1472 = vmatpush.msra.mxu0 0.0
        %1473 = vmatpush.msra.mxu0 0.0
        %1474 = vmatpush.msra.mxu0 0.0
        %1475 = vmatpush.msra.mxu0 0.0
        %1476 = vmatpush.msra.mxu0 0.0
        %1477 = vmatpush.msra.mxu0 0.0
        %1478 = vmatpush.msra.mxu0 0.0
        %1479 = vmatpush.msra.mxu0 0.0
        %1480 = vmatpush.msra.mxu0 %v1464
        %1481 = vmatpush.msra.mxu0 %v1463
        %1482 = vmatpush.msra.mxu0 %v1462
        %1483 = vmatpush.msra.mxu0 %v1461
        %1484 = vmatmul.f32.gmra.mxu0 %v1466
        %v1485 = vpop.f32.mrf.mxu0
        %v1486 = vadd.f32 0.0, %v1485
        %1487 = vdwg.mxu0
        %v1489 = vsel %vm1433, %v1417, 0
        %1491 = vmatpush.msra.mxu0 0.0
        %1492 = vmatpush.msra.mxu0 0.0
        %1493 = vmatpush.msra.mxu0 0.0
        %1494 = vmatpush.msra.mxu0 0.0
        %1495 = vmatpush.msra.mxu0 0.0
        %1496 = vmatpush.msra.mxu0 0.0
        %1497 = vmatpush.msra.mxu0 0.0
        %1498 = vmatpush.msra.mxu0 0.0
        %1499 = vmatpush.msra.mxu0 0.0
        %1500 = vmatpush.msra.mxu0 0.0
        %1501 = vmatpush.msra.mxu0 0.0
        %1502 = vmatpush.msra.mxu0 0.0
        %1503 = vmatpush.msra.mxu0 %v1460
        %1504 = vmatpush.msra.mxu0 %v1459
        %1505 = vmatpush.msra.mxu0 %v1458
        %1506 = vmatpush.msra.mxu0 %v1457
        %1507 = vmatmul.f32.gmra.mxu0 %v1489
        %v1508 = vpop.f32.mrf.mxu0
        %v1509 = vadd.f32 %v1486, %v1508
        %1510 = vdwg.mxu0
        %v1511 = vld [vmem:[%s25] sm:$0x1]
        %v1513 = vperm.slane %v1511, 0
        %v1515 = vadd.f32 %v1509, %v1513
        %v1516 = vld [vmem:[%s27] sm:$0x1]
        %v1518 = vperm.slane %v1516, 0
        %v1520 = vmul.f32 %v1515, %v1518
        %v1522 = vrot.slane %v1520, 1
        %v1523 = vperm.slane %v1520, 0
        %v1524 = vperm.slane %v1522, 0
        %v1527 = vmul.f32 %v1523, %v1419
        %v1528 = vmul.f32 %v1524, %v1420
        %v1529 = vsel %vm1433, %v1527, 0.0
        %1530 = vadd.xlane.f32.xlu0 %v1529
        %v1531 = vpop.xlane.xlu0 %1530
        %v1532 = vsel %vm1433, %v1528, 0.0
        %1533 = vadd.xlane.f32.xlu0 %v1532
        %v1534 = vpop.xlane.xlu0 %1533
        %s1535 = sld [smem:[#allocation8]]
        %v1536 = vstv %s1535
        %v1537 = vadd.f32 %v1531, %v1536
        %v1538 = vadd.f32 %v1534, %v1536
        %v1541 = vlaneseq
        %v1542 = vand.u32 %v1541, 127
        %v1543 = vperm.slane %v1537, %v1542
        %v1544 = vperm.slane %v1538, %v1542
        %vm1545 = vcmask 1041409
        %v1546 = vsel %vm1545, %v1544, %v1543
        %vm1548 = vcmask 58368
        %v1549 = vsel %vm1548, %v1546, -inf
        %1550 = vmax.xlane.f32.xlu0 %v1549
        %v1551 = vpop.xlane.xlu0 %1550
        %v1553 = vperm.slane %v1551, 0
        %v1554 = vperm.slane %v1551, 1
        %v1557 = vsub.f32 %v1537, %v1553
        %v1558 = vsub.f32 %v1538, %v1554
        %v1559 = vmul.f32 %v1557, 1.442695
        %v1560 = vpow.pop %v1559
        %v1561 = vmul.f32 %v1558, 1.442695
        %v1562 = vpow.pop %v1561
        %1565 = vset.pattern.permute.xlu0 0
        %1566 = vperm.xlu0 %1565, %v1560
        %v1567 = vpop.permute.xlu0 %1566
        %1568 = vset.pattern.permute.xlu0 0
        %1569 = vperm.xlu0 %1568, %v1562
        %v1570 = vpop.permute.xlu0 %1569
        %v1571 = vperm.slane %v1567, %v1542
        %v1572 = vperm.slane %v1570, %v1542
        %v1573 = vsel %vm1545, %v1572, %v1571
        %v1575 = vsel %vm1548, %v1573, 0.0
        %1576 = vadd.xlane.f32.xlu0 %v1575
        %v1577 = vpop.xlane.xlu0 %1576
        %v1579 = vperm.slane %v1577, 0
        %v1580 = vperm.slane %v1577, 1
        %v1583 = vrcp.pop %v1579
        %v1584 = vmul.f32 %v1579, %v1583
        %v1585 = vsub.f32 1.0, %v1584
        %v1586 = vmul.f32 %v1583, %v1585
        %v1587 = vadd.f32 %v1583, %v1586
        %vm1588 = vweird.f32 %v1579
        %vm1589 = vweird.f32 %v1583
        %vm1590 = vmor %vm1588, %vm1589
        %v1591 = vsel %vm1590, %v1583, %v1587
        %v1592 = vand.u32 2147483647, %v1579
        %vm1593 = vcmp.eq.f32.partialorder %v1592, 8.507059e+37
        %v1594 = vand.u32 %v1579, 2147483648
        %v1595 = vor.u32 1.1754944e-38, %v1594
        %v1596 = vsel %vm1593, %v1595, %v1591
        %v1597 = vmul.f32 %v1560, %v1596
        %v1598 = vrcp.pop %v1580
        %v1599 = vmul.f32 %v1580, %v1598
        %v1600 = vsub.f32 1.0, %v1599
        %v1601 = vmul.f32 %v1598, %v1600
        %v1602 = vadd.f32 %v1598, %v1601
        %vm1603 = vweird.f32 %v1580
        %vm1604 = vweird.f32 %v1598
        %vm1605 = vmor %vm1603, %vm1604
        %v1606 = vsel %vm1605, %v1598, %v1602
        %v1607 = vand.u32 2147483647, %v1580
        %vm1608 = vcmp.eq.f32.partialorder %v1607, 8.507059e+37
        %v1609 = vand.u32 %v1580, 2147483648
        %v1610 = vor.u32 1.1754944e-38, %v1609
        %v1611 = vsel %vm1608, %v1610, %v1606
        %v1612 = vmul.f32 %v1562, %v1611
        %1614 = vset.pattern.permute.xlu0 0
        %1615 = vperm.xlu0 %1614, %v1597
        %v1616 = vpop.permute.xlu0 %1615
        %1619 = vset.pattern.permute.xlu0 0
        %1620 = vperm.xlu0 %1619, %v1612
        %v1621 = vpop.permute.xlu0 %1620
        %v1623 = vmul.f32 %v1616, %v1419
        %v1624 = vmul.f32 %v1621, %v1420
        %v1625 = vsel %vm1433, %v1623, 0.0
        %v1626 = vrot.slane %v1625, 4
        %v1627 = vadd.f32 %v1625, %v1626
        %v1628 = vrot.slane %v1627, 2
        %v1629 = vadd.f32 %v1627, %v1628
        %v1630 = vrot.slane %v1629, 1
        %v1631 = vadd.f32 %v1629, %v1630
        %v1632 = vsel %vm1433, %v1624, 0.0
        %v1633 = vrot.slane %v1632, 4
        %v1634 = vadd.f32 %v1632, %v1633
        %v1635 = vrot.slane %v1634, 2
        %v1636 = vadd.f32 %v1634, %v1635
        %v1637 = vrot.slane %v1636, 1
        %v1638 = vadd.f32 %v1636, %v1637
        %v1639 = vld [vmem:[#allocation16] sm:$0x3]
        %v1640 = vmul.f32 %v1418, %v1639
        %v1641 = vld [vmem:[#allocation19] sm:$0xff]
        %v1642 = vld [vmem:[#allocation19 + $0x8] sm:$0xff]
        %v1643 = vld [vmem:[#allocation19 + $0x10] sm:$0xff]
        %v1644 = vld [vmem:[#allocation19 + $0x18] sm:$0xff]
        %v1645 = vld [vmem:[%s33] sm:$0x1]
        %v1647 = vperm.slane %v1645, 0
        %v1650 = vsel %vm1433, %v1640, 0
        %1652 = vmatpush.msra.mxu0 0.0
        %1653 = vmatpush.msra.mxu0 0.0
        %1654 = vmatpush.msra.mxu0 0.0
        %1655 = vmatpush.msra.mxu0 0.0
        %1656 = vmatpush.msra.mxu0 0.0
        %1657 = vmatpush.msra.mxu0 0.0
        %1658 = vmatpush.msra.mxu0 0.0
        %1659 = vmatpush.msra.mxu0 0.0
        %1660 = vmatpush.msra.mxu0 0.0
        %1661 = vmatpush.msra.mxu0 0.0
        %1662 = vmatpush.msra.mxu0 0.0
        %1663 = vmatpush.msra.mxu0 0.0
        %1664 = vmatpush.msra.mxu0 %v1644
        %1665 = vmatpush.msra.mxu0 %v1643
        %1666 = vmatpush.msra.mxu0 %v1642
        %1667 = vmatpush.msra.mxu0 %v1641
        %1668 = vmatmul.f32.gmra.mxu0 %v1650
        %v1669 = vpop.f32.mrf.mxu0
        %v1670 = vadd.f32 %v1647, %v1669
        %1671 = vdwg.mxu0
        %v1673 = vrot.slane %v1670, 1
        %v1674 = vld [vmem:[#allocation6] sm:$0xff]
        %v1675 = vld [vmem:[#allocation6 + $0x8] sm:$0xff]
        %v1676 = vld [vmem:[#allocation6 + $0x10] sm:$0xff]
        %v1677 = vld [vmem:[#allocation6 + $0x18] sm:$0xff]
        %v1678 = vperm.slane %v1670, 0
        %v1679 = vperm.slane %v1673, 0
        %v1682 = vmul.f32 %v1678, %v1674
        %v1683 = vmul.f32 %v1678, %v1675
        %v1684 = vmul.f32 %v1679, %v1676
        %v1685 = vmul.f32 %v1679, %v1677
        %v1686 = vld [vmem:[#allocation22] sm:$0xff]
        %v1687 = vld [vmem:[#allocation22 + $0x8] sm:$0xff]
        %v1688 = vld [vmem:[#allocation22 + $0x10] sm:$0xff]
        %v1689 = vld [vmem:[#allocation22 + $0x18] sm:$0xff]
        %v1690 = vld [vmem:[#allocation7] sm:$0xff]
        %v1691 = vld [vmem:[#allocation7 + $0x8] sm:$0xff]
        %v1692 = vld [vmem:[#allocation7 + $0x10] sm:$0xff]
        %v1693 = vld [vmem:[#allocation7 + $0x18] sm:$0xff]
        %v1695 = vsel %vm1433, %v1682, 0
        %v1698 = vsel %vm1433, %v1683, 0
        %v1701 = vsel %vm1433, %v1684, 0
        %v1704 = vsel %vm1433, %v1685, 0
        %1706 = vmatpush.msra.mxu0 0.0
        %1707 = vmatpush.msra.mxu0 0.0
        %1708 = vmatpush.msra.mxu0 0.0
        %1709 = vmatpush.msra.mxu0 0.0
        %1710 = vmatpush.msra.mxu0 0.0
        %1711 = vmatpush.msra.mxu0 0.0
        %1712 = vmatpush.msra.mxu0 0.0
        %1713 = vmatpush.msra.mxu0 0.0
        %1714 = vmatpush.msra.mxu0 0.0
        %1715 = vmatpush.msra.mxu0 0.0
        %1716 = vmatpush.msra.mxu0 0.0
        %1717 = vmatpush.msra.mxu0 0.0
        %1718 = vmatpush.msra.mxu0 %v1689
        %1719 = vmatpush.msra.mxu0 %v1688
        %1720 = vmatpush.msra.mxu0 %v1687
        %1721 = vmatpush.msra.mxu0 %v1686
        %1722 = vmatmul.f32.gmra.mxu0 %v1695
        %v1723 = vpop.f32.mrf.mxu0
        %v1724 = vadd.f32 %v1690, %v1723
        %1725 = vmatmul.f32.gmra.mxu0 %v1698
        %v1726 = vpop.f32.mrf.mxu0
        %v1727 = vadd.f32 %v1691, %v1726
        %1728 = vmatmul.f32.gmra.mxu0 %v1701
        %v1729 = vpop.f32.mrf.mxu0
        %v1730 = vadd.f32 %v1692, %v1729
        %1731 = vmatmul.f32.gmra.mxu0 %v1704
        %v1732 = vpop.f32.mrf.mxu0
        %v1733 = vadd.f32 %v1693, %v1732
        %1734 = vdwg.mxu0
        %vm1735 = vcmp.gt.f32.partialorder %v1724, 0.0
        %vm1736 = vcmp.gt.f32.partialorder %v1727, 0.0
        %vm1737 = vcmp.gt.f32.partialorder %v1730, 0.0
        %vm1738 = vcmp.gt.f32.partialorder %v1733, 0.0
        %v1739 = vmin.f32 %v1724, 0.0
        %v1740 = vmin.f32 %v1727, 0.0
        %v1741 = vmin.f32 %v1730, 0.0
        %v1742 = vmin.f32 %v1733, 0.0
        %v1743 = vmul.f32 %v1739, 1.442695
        %v1744 = vpow.pop %v1743
        %v1745 = vmul.f32 %v1740, 1.442695
        %v1746 = vpow.pop %v1745
        %v1747 = vmul.f32 %v1741, 1.442695
        %v1748 = vpow.pop %v1747
        %v1749 = vmul.f32 %v1742, 1.442695
        %v1750 = vpow.pop %v1749
        %v1751 = vsub.f32 %v1744, 1.0
        %v1752 = vsub.f32 %v1746, 1.0
        %v1753 = vsub.f32 %v1748, 1.0
        %v1754 = vsub.f32 %v1750, 1.0
        %v1755 = vsel %vm1735, %v1724, %v1751
        %v1756 = vsel %vm1736, %v1727, %v1752
        %v1757 = vsel %vm1737, %v1730, %v1753
        %v1758 = vsel %vm1738, %v1733, %v1754
        %v1759 = vld [vmem:[#allocation25] sm:$0xff]
        %v1760 = vld [vmem:[#allocation25 + $0x8] sm:$0xff]
        %v1761 = vld [vmem:[#allocation25 + $0x10] sm:$0xff]
        %v1762 = vld [vmem:[#allocation25 + $0x18] sm:$0xff]
        %v1763 = vld [vmem:[%s47] sm:$0x1]
        %v1765 = vperm.slane %v1763, 0
        %v1768 = vsel %vm1433, %v1755, 0
        %v1771 = vsel %vm1433, %v1756, 0
        %v1774 = vsel %vm1433, %v1757, 0
        %v1777 = vsel %vm1433, %v1758, 0
        %1779 = vmatpush.msra.mxu0 0.0
        %1780 = vmatpush.msra.mxu0 0.0
        %1781 = vmatpush.msra.mxu0 0.0
        %1782 = vmatpush.msra.mxu0 0.0
        %1783 = vmatpush.msra.mxu0 0.0
        %1784 = vmatpush.msra.mxu0 0.0
        %1785 = vmatpush.msra.mxu0 0.0
        %1786 = vmatpush.msra.mxu0 0.0
        %1787 = vmatpush.msra.mxu0 0.0
        %1788 = vmatpush.msra.mxu0 0.0
        %1789 = vmatpush.msra.mxu0 0.0
        %1790 = vmatpush.msra.mxu0 0.0
        %1791 = vmatpush.msra.mxu0 %v1762
        %1792 = vmatpush.msra.mxu0 %v1761
        %1793 = vmatpush.msra.mxu0 %v1760
        %1794 = vmatpush.msra.mxu0 %v1759
        %1795 = vmatmul.f32.gmra.mxu0 %v1768
        %v1796 = vpop.f32.mrf.mxu0
        %v1797 = vadd.f32 %v1765, %v1796
        %1798 = vmatmul.f32.gmra.mxu0 %v1771
        %v1799 = vpop.f32.mrf.mxu0
        %v1800 = vadd.f32 %v1765, %v1799
        %1801 = vmatmul.f32.gmra.mxu0 %v1774
        %v1802 = vpop.f32.mrf.mxu0
        %v1803 = vadd.f32 %v1765, %v1802
        %1804 = vmatmul.f32.gmra.mxu0 %v1777
        %v1805 = vpop.f32.mrf.mxu0
        %v1806 = vadd.f32 %v1765, %v1805
        %1807 = vdwg.mxu0
        %v1808 = vmul.f32 %v1797, %v1631
        %v1809 = vmul.f32 %v1800, %v1631
        %v1810 = vmul.f32 %v1803, %v1638
        %v1811 = vmul.f32 %v1806, %v1638
        %vm1812 = vcmp.gt.f32.partialorder %v1808, 0.0
        %vm1813 = vcmp.gt.f32.partialorder %v1809, 0.0
        %vm1814 = vcmp.gt.f32.partialorder %v1810, 0.0
        %vm1815 = vcmp.gt.f32.partialorder %v1811, 0.0
        %v1816 = vmin.f32 %v1808, 0.0
        %v1817 = vmin.f32 %v1809, 0.0
        %v1818 = vmin.f32 %v1810, 0.0
        %v1819 = vmin.f32 %v1811, 0.0
        %v1820 = vmul.f32 %v1816, 1.442695
        %v1821 = vpow.pop %v1820
        %v1822 = vmul.f32 %v1817, 1.442695
        %v1823 = vpow.pop %v1822
        %v1824 = vmul.f32 %v1818, 1.442695
        %v1825 = vpow.pop %v1824
        %v1826 = vmul.f32 %v1819, 1.442695
        %v1827 = vpow.pop %v1826
        %v1828 = vsub.f32 %v1821, 1.0
        %v1829 = vsub.f32 %v1823, 1.0
        %v1830 = vsub.f32 %v1825, 1.0
        %v1831 = vsub.f32 %v1827, 1.0
        %v1832 = vsel %vm1812, %v1808, %v1828
        %v1833 = vsel %vm1813, %v1809, %v1829
        %v1834 = vsel %vm1814, %v1810, %v1830
        %v1835 = vsel %vm1815, %v1811, %v1831
        %v1836 = vld [vmem:[%s49] sm:$0x1]
        %v1838 = vperm.slane %v1836, 0
        %v1840 = vmul.f32 %v1832, %v1838
        %v1841 = vmul.f32 %v1833, %v1838
        %v1842 = vmul.f32 %v1834, %v1838
        %v1843 = vmul.f32 %v1835, %v1838
        %v1844 = vsel %vm1433, %v1840, 0.0
        %1845 = vadd.xlane.f32.xlu0 %v1844
        %v1846 = vpop.xlane.xlu0 %1845
        %v1847 = vsel %vm1433, %v1841, 0.0
        %1848 = vadd.xlane.f32.xlu0 %v1847
        %v1849 = vpop.xlane.xlu0 %1848
        %v1850 = vsel %vm1433, %v1842, 0.0
        %1851 = vadd.xlane.f32.xlu0 %v1850
        %v1852 = vpop.xlane.xlu0 %1851
        %v1853 = vsel %vm1433, %v1843, 0.0
        %1854 = vadd.xlane.f32.xlu0 %v1853
        %v1855 = vpop.xlane.xlu0 %1854
        %s1856 = sld [smem:[#allocation9]]
        %v1857 = vstv %s1856
        %v1858 = vadd.f32 %v1846, %v1857
        %v1859 = vadd.f32 %v1849, %v1857
        %v1860 = vadd.f32 %v1852, %v1857
        %v1861 = vadd.f32 %v1855, %v1857
        %v1866 = vperm.slane %v1858, %v1542
        %v1867 = vadd.s32 %v1542, 4294967288
        %v1868 = vperm.slane %v1859, %v1867
        %vm1869 = vcmask 130112
        %v1870 = vsel %vm1869, %v1868, %v1866
        %v1871 = vperm.slane %v1860, %v1542
        %v1872 = vperm.slane %v1861, %v1867
        %v1873 = vsel %vm1869, %v1872, %v1871
        %v1874 = vsel %vm1545, %v1873, %v1870
        %vm1876 = vcmask 123904
        %v1877 = vsel %vm1876, %v1874, -inf
        %1878 = vmax.xlane.f32.xlu0 %v1877
        %v1879 = vpop.xlane.xlu0 %1878
        %v1881 = vperm.slane %v1879, 0
        %v1882 = vperm.slane %v1879, 1
        %v1885 = vsub.f32 %v1858, %v1881
        %v1886 = vsub.f32 %v1859, %v1881
        %v1887 = vsub.f32 %v1860, %v1882
        %v1888 = vsub.f32 %v1861, %v1882
        %v1889 = vmul.f32 %v1885, 1.442695
        %v1890 = vpow.pop %v1889
        %v1891 = vmul.f32 %v1886, 1.442695
        %v1892 = vpow.pop %v1891
        %v1893 = vmul.f32 %v1887, 1.442695
        %v1894 = vpow.pop %v1893
        %v1895 = vmul.f32 %v1888, 1.442695
        %v1896 = vpow.pop %v1895
        %1901 = vset.pattern.permute.xlu0 0
        %1902 = vperm.xlu0 %1901, %v1890
        %v1903 = vpop.permute.xlu0 %1902
        %1904 = vset.pattern.permute.xlu0 0
        %1905 = vperm.xlu0 %1904, %v1892
        %v1906 = vpop.permute.xlu0 %1905
        %1907 = vset.pattern.permute.xlu0 0
        %1908 = vperm.xlu0 %1907, %v1894
        %v1909 = vpop.permute.xlu0 %1908
        %1910 = vset.pattern.permute.xlu0 0
        %1911 = vperm.xlu0 %1910, %v1896
        %v1912 = vpop.permute.xlu0 %1911
        %v1913 = vperm.slane %v1903, %v1542
        %v1914 = vperm.slane %v1906, %v1867
        %v1915 = vsel %vm1869, %v1914, %v1913
        %v1916 = vperm.slane %v1909, %v1542
        %v1917 = vperm.slane %v1912, %v1867
        %v1918 = vsel %vm1869, %v1917, %v1916
        %v1919 = vsel %vm1545, %v1918, %v1915
        %v1921 = vsel %vm1876, %v1919, 0.0
        %1922 = vadd.xlane.f32.xlu0 %v1921
        %v1923 = vpop.xlane.xlu0 %1922
        %v1925 = vperm.slane %v1923, 0
        %v1926 = vperm.slane %v1923, 1
        %v1929 = vrcp.pop %v1925
        %v1930 = vmul.f32 %v1925, %v1929
        %v1931 = vsub.f32 1.0, %v1930
        %v1932 = vmul.f32 %v1929, %v1931
        %v1933 = vadd.f32 %v1929, %v1932
        %vm1934 = vweird.f32 %v1925
        %vm1935 = vweird.f32 %v1929
        %vm1936 = vmor %vm1934, %vm1935
        %v1937 = vsel %vm1936, %v1929, %v1933
        %v1938 = vand.u32 2147483647, %v1925
        %vm1939 = vcmp.eq.f32.partialorder %v1938, 8.507059e+37
        %v1940 = vand.u32 %v1925, 2147483648
        %v1941 = vor.u32 1.1754944e-38, %v1940
        %v1942 = vsel %vm1939, %v1941, %v1937
        %v1943 = vmul.f32 %v1890, %v1942
        %v1944 = vmul.f32 %v1892, %v1942
        %v1945 = vrcp.pop %v1926
        %v1946 = vmul.f32 %v1926, %v1945
        %v1947 = vsub.f32 1.0, %v1946
        %v1948 = vmul.f32 %v1945, %v1947
        %v1949 = vadd.f32 %v1945, %v1948
        %vm1950 = vweird.f32 %v1926
        %vm1951 = vweird.f32 %v1945
        %vm1952 = vmor %vm1950, %vm1951
        %v1953 = vsel %vm1952, %v1945, %v1949
        %v1954 = vand.u32 2147483647, %v1926
        %vm1955 = vcmp.eq.f32.partialorder %v1954, 8.507059e+37
        %v1956 = vand.u32 %v1926, 2147483648
        %v1957 = vor.u32 1.1754944e-38, %v1956
        %v1958 = vsel %vm1955, %v1957, %v1953
        %v1959 = vmul.f32 %v1894, %v1958
        %v1960 = vmul.f32 %v1896, %v1958
        %v1961 = vld [vmem:[#allocation5] sm:$0xff]
        %v1962 = vld [vmem:[#allocation5 + $0x8] sm:$0xff]
        %v1963 = vld [vmem:[#allocation5 + $0x10] sm:$0xff]
        %v1964 = vld [vmem:[#allocation5 + $0x18] sm:$0xff]
        %1966 = vset.pattern.permute.xlu0 0
        %1967 = vperm.xlu0 %1966, %v1943
        %v1968 = vpop.permute.xlu0 %1967
        %1971 = vset.pattern.permute.xlu0 0
        %1972 = vperm.xlu0 %1971, %v1944
        %v1973 = vpop.permute.xlu0 %1972
        %1976 = vset.pattern.permute.xlu0 0
        %1977 = vperm.xlu0 %1976, %v1959
        %v1978 = vpop.permute.xlu0 %1977
        %1981 = vset.pattern.permute.xlu0 0
        %1982 = vperm.xlu0 %1981, %v1960
        %v1983 = vpop.permute.xlu0 %1982
        %v1985 = vmul.f32 %v1968, %v1961
        %v1986 = vmul.f32 %v1973, %v1962
        %v1987 = vmul.f32 %v1978, %v1963
        %v1988 = vmul.f32 %v1983, %v1964
        %v1989 = vsel %vm1433, %v1985, 0.0
        %v1990 = vsel %vm1433, %v1986, 0.0
        %v1991 = vadd.f32 %v1989, %v1990
        %v1992 = vrot.slane %v1991, 4
        %v1993 = vadd.f32 %v1991, %v1992
        %v1994 = vrot.slane %v1993, 2
        %v1995 = vadd.f32 %v1993, %v1994
        %v1996 = vrot.slane %v1995, 1
        %v1997 = vadd.f32 %v1995, %v1996
        %v1998 = vsel %vm1433, %v1987, 0.0
        %v1999 = vsel %vm1433, %v1988, 0.0
        %v2000 = vadd.f32 %v1998, %v1999
        %v2001 = vrot.slane %v2000, 4
        %v2002 = vadd.f32 %v2000, %v2001
        %v2003 = vrot.slane %v2002, 2
        %v2004 = vadd.f32 %v2002, %v2003
        %v2005 = vrot.slane %v2004, 1
        %v2006 = vadd.f32 %v2004, %v2005
        %v2007 = vld [vmem:[#allocation27] sm:$0xff]
        %v2008 = vld [vmem:[#allocation27 + $0x8] sm:$0xff]
        %v2009 = vld [vmem:[#allocation27 + $0x10] sm:$0xff]
        %v2010 = vld [vmem:[#allocation27 + $0x18] sm:$0xff]
        %v2011 = vld [vmem:[#allocation28] sm:$0xff]
        %v2012 = vld [vmem:[#allocation28 + $0x8] sm:$0xff]
        %v2013 = vld [vmem:[#allocation28 + $0x10] sm:$0xff]
        %v2014 = vld [vmem:[#allocation28 + $0x18] sm:$0xff]
        %v2016 = vsel %vm1433, %v1418, 0
        %2018 = vmatpush.msra.mxu0 0.0
        %2019 = vmatpush.msra.mxu0 0.0
        %2020 = vmatpush.msra.mxu0 0.0
        %2021 = vmatpush.msra.mxu0 0.0
        %2022 = vmatpush.msra.mxu0 0.0
        %2023 = vmatpush.msra.mxu0 0.0
        %2024 = vmatpush.msra.mxu0 0.0
        %2025 = vmatpush.msra.mxu0 0.0
        %2026 = vmatpush.msra.mxu0 0.0
        %2027 = vmatpush.msra.mxu0 0.0
        %2028 = vmatpush.msra.mxu0 0.0
        %2029 = vmatpush.msra.mxu0 0.0
        %2030 = vmatpush.msra.mxu0 %v2014
        %2031 = vmatpush.msra.mxu0 %v2013
        %2032 = vmatpush.msra.mxu0 %v2012
        %2033 = vmatpush.msra.mxu0 %v2011
        %2034 = vmatmul.f32.gmra.mxu0 %v2016
        %v2035 = vpop.f32.mrf.mxu0
        %v2036 = vadd.f32 0.0, %v2035
        %2037 = vdwg.mxu0
        %v2040 = vsel %vm1545, %v2006, %v1997
        %v2041 = vsel %vm1433, %v2040, 0
        %2043 = vmatpush.msra.mxu0 0.0
        %2044 = vmatpush.msra.mxu0 0.0
        %2045 = vmatpush.msra.mxu0 0.0
        %2046 = vmatpush.msra.mxu0 0.0
        %2047 = vmatpush.msra.mxu0 0.0
        %2048 = vmatpush.msra.mxu0 0.0
        %2049 = vmatpush.msra.mxu0 0.0
        %2050 = vmatpush.msra.mxu0 0.0
        %2051 = vmatpush.msra.mxu0 0.0
        %2052 = vmatpush.msra.mxu0 0.0
        %2053 = vmatpush.msra.mxu0 0.0
        %2054 = vmatpush.msra.mxu0 0.0
        %2055 = vmatpush.msra.mxu0 %v2010
        %2056 = vmatpush.msra.mxu0 %v2009
        %2057 = vmatpush.msra.mxu0 %v2008
        %2058 = vmatpush.msra.mxu0 %v2007
        %2059 = vmatmul.f32.gmra.mxu0 %v2041
        %v2060 = vpop.f32.mrf.mxu0
        %v2061 = vadd.f32 %v2036, %v2060
        %2062 = vdwg.mxu0
        %v2063 = vld [vmem:[%s57] sm:$0x1]
        %v2065 = vperm.slane %v2063, 0
        %v2067 = vadd.f32 %v2061, %v2065
        %v2070 = vsel %vm1545, %v1638, %v1631
        %vm2072 = vcmask 254976
        %2073 = vst.msk [vmem:[#allocation2] sm:$0x3] %vm2072, %v2070
        %2074 = vst.msk [vmem:[#allocation3] sm:$0x3] %vm2072, %v2067
        %p2075 = scmp.eq.s32.totalorder %s89, 3
        // Predicated region
        $region189: #{tpu_custom_call.1} parent=135 // pred_check
          %p2076 = pneg %p2075
        $region190: #{tpu_custom_call.1} parent=135 // pred_check_branch
          %2078 = sbr.rel (%p2076) target = $region192
        $region191: #{tpu_custom_call.1} parent=135 // pred_region
          %2079 = vst.msk [vmem:[#allocation30] sm:$0x3] %vm2072, %v2070
          %2080 = vst.msk [vmem:[#allocation31] sm:$0x3] %vm2072, %v2067
        $region192: #{tpu_custom_call.1} parent=135 // pred_fallthru
          _
        // Predicated region
        $region193: #{tpu_custom_call.1} parent=135 // pred_check
          %p2081 = pneg %p753
        $region194: #{tpu_custom_call.1} parent=135 // pred_check_branch
          %2083 = sbr.rel (%p2081) target = $region196
        $region195: #{tpu_custom_call.1} parent=135 // pred_region
          %2085 = vsyncadd [#allocation12], 0
          %s2086 = smul.addr %s88, 2
          %s2087 = scalar_lea.hbm %s59, %s2086
          %s2089 = sshll.u32 [#allocation30], 4
          %s2090 = int_to_ptr.vmem [resolvable:$true] %s2089
          %s2091 = sshll.u32 %s2087, 4
          %s2092 = int_to_ptr.hbm [resolvable:$true] %s2091
          %2094 = dma.vmem_to_hbm [thread:$0]  %s2090, 32, %s2092, [#allocation12]
        $region196: #{tpu_custom_call.1} parent=135 // pred_fallthru
          _
        // Predicated region
        $region197: #{tpu_custom_call.1} parent=135 // pred_check
          %p2095 = pneg %p779
        $region198: #{tpu_custom_call.1} parent=135 // pred_check_branch
          %2097 = sbr.rel (%p2095) target = $region200
        $region199: #{tpu_custom_call.1} parent=135 // pred_region
          %2099 = vsyncadd [#allocation32], 0
          %s2100 = smul.addr %s88, 2
          %s2101 = scalar_lea.hbm %s61, %s2100
          %s2103 = sshll.u32 [#allocation31], 4
          %s2104 = int_to_ptr.vmem [resolvable:$true] %s2103
          %s2105 = sshll.u32 %s2101, 4
          %s2106 = int_to_ptr.hbm [resolvable:$true] %s2105
          %2108 = dma.vmem_to_hbm [thread:$0]  %s2104, 32, %s2106, [#allocation32]
        $region200: #{tpu_custom_call.1} parent=135 // pred_fallthru
          _
        // Predicated region
        $region201: #{tpu_custom_call.1} parent=135 // pred_check
          %p2109 = pneg %p753
        $region202: #{tpu_custom_call.1} parent=135 // pred_check_branch
          %2111 = sbr.rel (%p2109) target = $region204
        $region203: #{tpu_custom_call.1} parent=135 // pred_region
          %2113 = dma.done [#allocation12], 32
        $region204: #{tpu_custom_call.1} parent=135 // pred_fallthru
          _
        // Predicated region
        $region205: #{tpu_custom_call.1} parent=135 // pred_check
          %p2114 = pneg %p779
        $region206: #{tpu_custom_call.1} parent=135 // pred_check_branch
          %2116 = sbr.rel (%p2114) target = $region208
        $region207: #{tpu_custom_call.1} parent=135 // pred_region
          %2118 = dma.done [#allocation32], 32
        $region208: #{tpu_custom_call.1} parent=135 // pred_fallthru
          _
      $region136: #{tpu_custom_call.1} parent=5 // pred_fallthru
        _
      %p2119 = scmp.le.s32.totalorder 2, %s79
      // Predicated region
      $region209: #{tpu_custom_call.1} parent=5 // pred_check
        %p2120 = pneg %p2119
      $region210: #{tpu_custom_call.1} parent=5 // pred_check_branch
        %2122 = sbr.rel (%p2120) target = $region212
      $region211: #{tpu_custom_call.1} parent=5 // pred_region
        %s2123 = ssub.s32 %s79, 2
      $region212: #{tpu_custom_call.1} parent=5 // pred_fallthru
        _
    $region6: #{tpu_custom_call.1} parent=1 // loop_footer
      %s83 = sadd.s32 1, %s79
    $region7: #{tpu_custom_call.1} parent=1 // loop_footer_branch
      %78 = sbr.rel target = $region3
    $region8: #{tpu_custom_call.1} parent=1 // loop_exit
      _
    %2124 = vsyncpa [#allocation11], 1
    %s2125 = scalar_lea.sflag [#allocation11], 1
    %2126 = vsyncpa %s2125, 1
    %2127 = vsyncpa [#allocation14], 1
    %2128 = vsyncpa [#allocation17], 1
    %2129 = vsyncpa [#allocation20], 1
    %2130 = vsyncpa [#allocation23], 1
    %2131 = vsyncpa [#allocation26], 1
    %2132 = vsyncpa [#allocation29], 1
    %2133 = vsyncpa [#allocation12], 1
    %s2134 = scalar_lea.sflag [#allocation12], 1
    %2135 = vsyncpa %s2134, 1
    %2136 = vsyncpa [#allocation32], 1

</llo_original>
